<compile_context>
chip_gen: v5e
topology: v5e:2x2
jax: 0.10.0
libtpu: 0.0.40
codegen_flags: <defaults>
</compile_context>

<pallas_src>
import math
import functools

import numpy as np
import jax
import jax.numpy as jnp
from jax.experimental import pallas as pl
from jax.experimental.pallas import tpu as pltpu

# uint32 prime 2654435761 wrapped into int32 (bit-identical wrapping multiply on TPU)
_PRIME_Y = -1640531535


def _hash_sideout_kernel(coords_ref, ft_ref, bias_ref, o_ref, *,
                         res_levels, table_size, n_levels):
    # coords_ref : (1, 2, tile_n)        f32   lane-dense points (x row, y row)
    # ft_ref     : (1, L, OUT, T)        f32   per-batch per-level folded tables
    # bias_ref   : (OUT, 1)              f32   output bias
    # o_ref      : (1, OUT, tile_n)      f32
    coords = coords_ref[0]                       # (2, tile_n)
    xs = coords[0:1, :]                          # (1, tile_n)
    ys = coords[1:2, :]                          # (1, tile_n)
    tile_n = xs.shape[1]

    # sublane iota over one hash table (T sublanes x tile_n lanes); built once
    sub_iota = jax.lax.broadcasted_iota(jnp.int32, (table_size, tile_n), 0)

    # ---- multi-resolution hash retrieval, fused weighted one-hot per level ----
    # TODO(synk): reference CUDA HashTableRetrieve may use direct (non-hashed)
    # indexing for coarse levels where (res+1)^2 <= T; here every level hashes.
    acc = None
    for l in range(n_levels):
        res = res_levels[l]
        px = xs * res
        py = ys * res
        x0f = jnp.floor(px)
        y0f = jnp.floor(py)
        fx = px - x0f                            # (1, tile_n)
        fy = py - y0f
        x0 = x0f.astype(jnp.int32)
        y0 = y0f.astype(jnp.int32)
        gx = 1.0 - fx
        gy = 1.0 - fy

        corners = ((0, 0, gx * gy), (1, 0, fx * gy),
                   (0, 1, gx * fy), (1, 1, fx * fy))

        blk = None
        for dx, dy, wxy in corners:
            h = jnp.bitwise_xor(x0 + dx, (y0 + dy) * _PRIME_Y)   # (1, tile_n)
            idx = jnp.bitwise_and(h, table_size - 1)             # in [0, T)
            # weighted one-hot: bilinear weight placed at the hashed row
            contrib = jnp.where(sub_iota == idx, wxy, 0.0)       # (T, tile_n)
            blk = contrib if blk is None else blk + contrib

        # (OUT, T) @ (T, tile_n) -> (OUT, tile_n), MXU, f32 accumulation
        part = jnp.dot(ft_ref[0, l], blk, preferred_element_type=jnp.float32)
        acc = part if acc is None else acc + part

    o_ref[0] = acc + bias_ref[...]


def hash_sideout_forward(x, coords, s, params, *, res_min, res_max, tile_n=None):
    """x: (B, L, 2*T), coords: (B, N, 2), s: (B, S). Returns (B, 3, res_max, res_max)."""
    w, aw, ab, bias = params
    B, L, HS = x.shape
    T = HS // 2
    assert T & (T - 1) == 0, "hash table size must be a power of two"
    N = coords.shape[1]
    OUT, IN = w.shape
    assert IN == 2 * L and N == res_max * res_max

    if tile_n is None:
        tile_n = next((t for t in (2048, 1024, 512, 256, 128) if N % t == 0), N)
    assert N % tile_n == 0

    # per-level resolutions (geometric between res_min and res_max)
    if L > 1:
        growth = math.exp((math.log(res_max) - math.log(res_min)) / (L - 1))
    else:
        growth = 1.0
    res_levels = tuple(float(math.floor(res_min * growth ** l)) for l in range(L))
    scale = 1.0 / math.sqrt(IN)

    # ---- ModulatedLinear weight, hoisted out of the kernel (per-batch, tiny) ----
    # TODO(synk): coordinate convention px = x * res (no offset / res-1 handling)
    # kept from the reference re-implementation; verify against the CUDA op.
    style = s @ aw.T + ab                                     # (B, IN)
    w_mod = w[None, :, :] * scale * style[:, None, :]         # (B, OUT, IN)
    demod = jax.lax.rsqrt(jnp.sum(w_mod * w_mod, axis=2, keepdims=True) + 1e-8)
    w_mod = w_mod * demod                                     # (B, OUT, IN)

    # ---- fold the modulated weight into the hash tables -> (B, L, OUT, T) ----
    tables4 = x.reshape(B, L, T, 2)                           # (B, L, T, 2)
    w_lc = w_mod.reshape(B, OUT, L, 2)                        # (B, OUT, L, 2)
    folded = jnp.einsum('bltc,bolc->blot', tables4, w_lc)     # (B, L, OUT, T)

    coords_t = jnp.transpose(coords, (0, 2, 1)).astype(jnp.float32)   # (B, 2, N)
    bias_col = bias.reshape(OUT, 1).astype(jnp.float32)

    kernel = functools.partial(_hash_sideout_kernel,
                               res_levels=res_levels, table_size=T, n_levels=L)

    grid = (B, N // tile_n)   # b outer, points inner: folded table block stays resident
    out_flat = pl.pallas_call(
        kernel,
        out_shape=jax.ShapeDtypeStruct((B, OUT, N), jnp.float32),
        grid=grid,
        in_specs=[
            pl.BlockSpec((1, 2, tile_n), lambda b, j: (b, 0, j)),        # coords (transposed)
            pl.BlockSpec((1, L, OUT, T), lambda b, j: (b, 0, 0, 0)),     # folded tables
            pl.BlockSpec((OUT, 1), lambda b, j: (0, 0)),                 # output bias
        ],
        out_specs=pl.BlockSpec((1, OUT, tile_n), lambda b, j: (b, 0, j)),
        compiler_params=pltpu.CompilerParams(
            dimension_semantics=("parallel", "parallel")),
    )(coords_t, folded.astype(jnp.float32), bias_col)

    # (B, 3, N) -> (B, 3, res_max, res_max): pure reshape, no transpose needed
    return out_flat.reshape(B, OUT, res_max, res_max)


def _reference(x, coords, s, params, *, res_min, res_max):
    """Pure-JAX reference mirroring HashTableRetrieve + ModulatedLinear."""
    w, aw, ab, bias = params
    B, L, HS = x.shape
    T = HS // 2
    OUT, IN = w.shape
    N = coords.shape[1]
    if L > 1:
        growth = math.exp((math.log(res_max) - math.log(res_min)) / (L - 1))
    else:
        growth = 1.0
    res_levels = [float(math.floor(res_min * growth ** l)) for l in range(L)]

    tables4 = x.reshape(B, L, T, 2)
    feats = []
    for l in range(L):
        res = res_levels[l]
        px = coords[..., 0] * res                 # (B, N)
        py = coords[..., 1] * res
        x0f = jnp.floor(px)
        y0f = jnp.floor(py)
        fx = px - x0f
        fy = py - y0f
        x0 = x0f.astype(jnp.int32)
        y0 = y0f.astype(jnp.int32)
        f_l = jnp.zeros((B, N, 2), jnp.float32)
        for dx, dy, wxy in ((0, 0, (1 - fx) * (1 - fy)), (1, 0, fx * (1 - fy)),
                            (0, 1, (1 - fx) * fy), (1, 1, fx * fy)):
            h = jnp.bitwise_xor(x0 + dx, (y0 + dy) * jnp.int32(_PRIME_Y))
            idx = jnp.bitwise_and(h, T - 1)                            # (B, N)
            idx3 = jnp.broadcast_to(idx[:, :, None], (B, N, 2))
            vals = jnp.take_along_axis(tables4[:, l], idx3, axis=1)    # (B, N, 2)
            f_l = f_l + wxy[..., None] * vals
        feats.append(f_l)
    feats = jnp.concatenate(feats, axis=-1)                            # (B, N, 2L)

    scale = 1.0 / math.sqrt(IN)
    style = s @ aw.T + ab
    w_mod = w[None, :, :] * scale * style[:, None, :]
    demod = jax.lax.rsqrt(jnp.sum(w_mod * w_mod, axis=2, keepdims=True) + 1e-8)
    w_mod = w_mod * demod
    out = jnp.einsum('bni,boi->bno', feats, w_mod) + bias              # (B, N, OUT)
    return out.reshape(B, res_max, res_max, OUT).transpose(0, 3, 1, 2)


if __name__ == "__main__":
    B = 2
    table_num = 4            # number of hash levels L
    table_size = 64          # T entries per level (power of 2), H_S = 2*T = 128
    res_min, res_max = 2, 16
    style_dim = 8
    N = res_max * res_max
    IN, OUT = table_num * 2, 3

    key = jax.random.PRNGKey(0)
    k1, k2, k3, k4 = jax.random.split(key, 4)

    # deterministic synthetic inputs
    x = (jax.random.normal(k1, (B, table_num, 2 * table_size), dtype=jnp.float32) * 0.1)
    s = jax.random.normal(k2, (B, style_dim), dtype=jnp.float32)

    # pixel-center coordinates of the res_max x res_max grid, row-major
    ii, jj = jnp.meshgrid(jnp.arange(res_max), jnp.arange(res_max), indexing="ij")
    coords = jnp.stack([(jj + 0.5) / res_max, (ii + 0.5) / res_max], axis=-1)
    coords = jnp.broadcast_to(coords.reshape(1, N, 2), (B, N, 2)).astype(jnp.float32)

    # deterministic ModulatedLinear parameters (synthetic init, no checkpoint load)
    w = jax.random.normal(k3, (OUT, IN), dtype=jnp.float32)
    aw = jax.random.normal(k4, (IN, style_dim), dtype=jnp.float32) / math.sqrt(style_dim)
    ab = jnp.ones((1, IN), dtype=jnp.float32)       # bias_init=1 (StyleGAN convention)
    bias = jnp.zeros((1, OUT), dtype=jnp.float32)

    params = (w, aw, ab, bias)
    out = hash_sideout_forward(x, coords, s, params, res_min=res_min, res_max=res_max)
    out = jax.block_until_ready(out)
    assert out.shape == (B, 3, res_max, res_max), out.shape
    assert bool(jnp.all(jnp.isfinite(out)))

    ref = jax.block_until_ready(_reference(x, coords, s, params,
                                           res_min=res_min, res_max=res_max))
    np.testing.assert_allclose(np.asarray(out), np.asarray(ref), atol=2e-4, rtol=2e-4)

    print("KERNEL_OK")
</pallas_src>

<mosaic_0001>
module attributes {stable_mosaic.version = 11 : i64} {
  func.func @_hash_sideout_kernel(%arg0: i32, %arg1: i32, %arg2: memref<1x2x256xf32, #tpu.memory_space<vmem>>, %arg3: memref<1x4x3x64xf32, #tpu.memory_space<vmem>>, %arg4: memref<3x1xf32, #tpu.memory_space<vmem>>, %arg5: memref<1x3x256xf32, #tpu.memory_space<vmem>>) attributes {dimension_semantics = [#tpu.dimension_semantics<parallel>, #tpu.dimension_semantics<parallel>], iteration_bounds = array<i64: 2, 1>, scalar_prefetch = 0 : i64, scratch_operands = 0 : i64, tpu.core_type = #tpu.core_type<tc>, window_params = [{transform_indices = @transform_0, window_bounds = array<i64: 1, 2, 256>}, {transform_indices = @transform_1, window_bounds = array<i64: 1, 4, 3, 64>}, {pipeline_mode = #tpu.pipeline_mode<synchronous>, transform_indices = @transform_2, window_bounds = array<i64: 3, 1>}, {transform_indices = @transform_3, window_bounds = array<i64: 1, 3, 256>}]} {
    %c0 = arith.constant 0 : index
    %c0_0 = arith.constant 0 : index
    %c0_1 = arith.constant 0 : index
    %0 = vector.load %arg2[%c0, %c0_0, %c0_1] : memref<1x2x256xf32, #tpu.memory_space<vmem>>, vector<1x2x256xf32>
    %1 = vector.shape_cast %0 : vector<1x2x256xf32> to vector<2x256xf32>
    %2 = vector.extract_strided_slice %1 {offsets = [0, 0], sizes = [1, 256], strides = [1, 1]} : vector<2x256xf32> to vector<1x256xf32>
    %3 = vector.extract_strided_slice %1 {offsets = [1, 0], sizes = [1, 256], strides = [1, 1]} : vector<2x256xf32> to vector<1x256xf32>
    %4 = tpu.iota {dimensions = array<i32: 0>} : vector<64x256xi32>
    %cst = arith.constant 2.000000e+00 : f32
    %5 = vector.broadcast %cst : f32 to vector<1x256xf32>
    %6 = arith.mulf %2, %5 : vector<1x256xf32>
    %cst_2 = arith.constant 2.000000e+00 : f32
    %7 = vector.broadcast %cst_2 : f32 to vector<1x256xf32>
    %8 = arith.mulf %3, %7 : vector<1x256xf32>
    %9 = math.floor %6 : vector<1x256xf32>
    %10 = math.floor %8 : vector<1x256xf32>
    %11 = arith.subf %6, %9 : vector<1x256xf32>
    %12 = arith.subf %8, %10 : vector<1x256xf32>
    %13 = arith.fptosi %9 : vector<1x256xf32> to vector<1x256xi32>
    %14 = arith.fptosi %10 : vector<1x256xf32> to vector<1x256xi32>
    %cst_3 = arith.constant 1.000000e+00 : f32
    %15 = vector.broadcast %cst_3 : f32 to vector<1x256xf32>
    %16 = arith.subf %15, %11 : vector<1x256xf32>
    %cst_4 = arith.constant 1.000000e+00 : f32
    %17 = vector.broadcast %cst_4 : f32 to vector<1x256xf32>
    %18 = arith.subf %17, %12 : vector<1x256xf32>
    %19 = arith.mulf %16, %18 : vector<1x256xf32>
    %20 = arith.mulf %11, %18 : vector<1x256xf32>
    %21 = arith.mulf %16, %12 : vector<1x256xf32>
    %22 = arith.mulf %11, %12 : vector<1x256xf32>
    %c0_i32 = arith.constant 0 : i32
    %23 = vector.broadcast %c0_i32 : i32 to vector<1x256xi32>
    %24 = arith.addi %13, %23 : vector<1x256xi32>
    %c0_i32_5 = arith.constant 0 : i32
    %25 = vector.broadcast %c0_i32_5 : i32 to vector<1x256xi32>
    %26 = arith.addi %14, %25 : vector<1x256xi32>
    %c-1640531535_i32 = arith.constant -1640531535 : i32
    %27 = vector.broadcast %c-1640531535_i32 : i32 to vector<1x256xi32>
    %28 = arith.muli %26, %27 : vector<1x256xi32>
    %29 = arith.xori %24, %28 : vector<1x256xi32>
    %c63_i32 = arith.constant 63 : i32
    %30 = vector.broadcast %c63_i32 : i32 to vector<1x256xi32>
    %31 = arith.andi %29, %30 : vector<1x256xi32>
    %32 = vector.broadcast %31 : vector<1x256xi32> to vector<64x256xi32>
    %33 = arith.cmpi eq, %4, %32 : vector<64x256xi32>
    %cst_6 = arith.constant 0.000000e+00 : f32
    %34 = vector.shape_cast %19 : vector<1x256xf32> to vector<1x256xf32>
    %35 = vector.broadcast %34 : vector<1x256xf32> to vector<64x256xf32>
    %36 = vector.broadcast %cst_6 : f32 to vector<64x256xf32>
    %37 = arith.select %33, %35, %36 : vector<64x256xi1>, vector<64x256xf32>
    %c1_i32 = arith.constant 1 : i32
    %38 = vector.broadcast %c1_i32 : i32 to vector<1x256xi32>
    %39 = arith.addi %13, %38 : vector<1x256xi32>
    %c0_i32_7 = arith.constant 0 : i32
    %40 = vector.broadcast %c0_i32_7 : i32 to vector<1x256xi32>
    %41 = arith.addi %14, %40 : vector<1x256xi32>
    %c-1640531535_i32_8 = arith.constant -1640531535 : i32
    %42 = vector.broadcast %c-1640531535_i32_8 : i32 to vector<1x256xi32>
    %43 = arith.muli %41, %42 : vector<1x256xi32>
    %44 = arith.xori %39, %43 : vector<1x256xi32>
    %c63_i32_9 = arith.constant 63 : i32
    %45 = vector.broadcast %c63_i32_9 : i32 to vector<1x256xi32>
    %46 = arith.andi %44, %45 : vector<1x256xi32>
    %47 = vector.broadcast %46 : vector<1x256xi32> to vector<64x256xi32>
    %48 = arith.cmpi eq, %4, %47 : vector<64x256xi32>
    %cst_10 = arith.constant 0.000000e+00 : f32
    %49 = vector.shape_cast %20 : vector<1x256xf32> to vector<1x256xf32>
    %50 = vector.broadcast %49 : vector<1x256xf32> to vector<64x256xf32>
    %51 = vector.broadcast %cst_10 : f32 to vector<64x256xf32>
    %52 = arith.select %48, %50, %51 : vector<64x256xi1>, vector<64x256xf32>
    %53 = arith.addf %37, %52 : vector<64x256xf32>
    %c0_i32_11 = arith.constant 0 : i32
    %54 = vector.broadcast %c0_i32_11 : i32 to vector<1x256xi32>
    %55 = arith.addi %13, %54 : vector<1x256xi32>
    %c1_i32_12 = arith.constant 1 : i32
    %56 = vector.broadcast %c1_i32_12 : i32 to vector<1x256xi32>
    %57 = arith.addi %14, %56 : vector<1x256xi32>
    %c-1640531535_i32_13 = arith.constant -1640531535 : i32
    %58 = vector.broadcast %c-1640531535_i32_13 : i32 to vector<1x256xi32>
    %59 = arith.muli %57, %58 : vector<1x256xi32>
    %60 = arith.xori %55, %59 : vector<1x256xi32>
    %c63_i32_14 = arith.constant 63 : i32
    %61 = vector.broadcast %c63_i32_14 : i32 to vector<1x256xi32>
    %62 = arith.andi %60, %61 : vector<1x256xi32>
    %63 = vector.broadcast %62 : vector<1x256xi32> to vector<64x256xi32>
    %64 = arith.cmpi eq, %4, %63 : vector<64x256xi32>
    %cst_15 = arith.constant 0.000000e+00 : f32
    %65 = vector.shape_cast %21 : vector<1x256xf32> to vector<1x256xf32>
    %66 = vector.broadcast %65 : vector<1x256xf32> to vector<64x256xf32>
    %67 = vector.broadcast %cst_15 : f32 to vector<64x256xf32>
    %68 = arith.select %64, %66, %67 : vector<64x256xi1>, vector<64x256xf32>
    %69 = arith.addf %53, %68 : vector<64x256xf32>
    %c1_i32_16 = arith.constant 1 : i32
    %70 = vector.broadcast %c1_i32_16 : i32 to vector<1x256xi32>
    %71 = arith.addi %13, %70 : vector<1x256xi32>
    %c1_i32_17 = arith.constant 1 : i32
    %72 = vector.broadcast %c1_i32_17 : i32 to vector<1x256xi32>
    %73 = arith.addi %14, %72 : vector<1x256xi32>
    %c-1640531535_i32_18 = arith.constant -1640531535 : i32
    %74 = vector.broadcast %c-1640531535_i32_18 : i32 to vector<1x256xi32>
    %75 = arith.muli %73, %74 : vector<1x256xi32>
    %76 = arith.xori %71, %75 : vector<1x256xi32>
    %c63_i32_19 = arith.constant 63 : i32
    %77 = vector.broadcast %c63_i32_19 : i32 to vector<1x256xi32>
    %78 = arith.andi %76, %77 : vector<1x256xi32>
    %79 = vector.broadcast %78 : vector<1x256xi32> to vector<64x256xi32>
    %80 = arith.cmpi eq, %4, %79 : vector<64x256xi32>
    %cst_20 = arith.constant 0.000000e+00 : f32
    %81 = vector.shape_cast %22 : vector<1x256xf32> to vector<1x256xf32>
    %82 = vector.broadcast %81 : vector<1x256xf32> to vector<64x256xf32>
    %83 = vector.broadcast %cst_20 : f32 to vector<64x256xf32>
    %84 = arith.select %80, %82, %83 : vector<64x256xi1>, vector<64x256xf32>
    %85 = arith.addf %69, %84 : vector<64x256xf32>
    %c0_21 = arith.constant 0 : index
    %c0_22 = arith.constant 0 : index
    %c0_23 = arith.constant 0 : index
    %c0_24 = arith.constant 0 : index
    %86 = vector.load %arg3[%c0_21, %c0_22, %c0_23, %c0_24] : memref<1x4x3x64xf32, #tpu.memory_space<vmem>>, vector<1x1x3x64xf32>
    %87 = vector.shape_cast %86 : vector<1x1x3x64xf32> to vector<3x64xf32>
    %cst_25 = arith.constant dense<0.000000e+00> : vector<3x256xf32>
    %88 = tpu.matmul %87, %85, %cst_25 {dimension_numbers = #tpu.dot_dimension_numbers<[1], [0], [0], [1], [0, 0, 1, 1], [], []>} : vector<3x64xf32>, vector<64x256xf32>, vector<3x256xf32> -> vector<3x256xf32>
    %cst_26 = arith.constant 4.000000e+00 : f32
    %89 = vector.broadcast %cst_26 : f32 to vector<1x256xf32>
    %90 = arith.mulf %2, %89 : vector<1x256xf32>
    %cst_27 = arith.constant 4.000000e+00 : f32
    %91 = vector.broadcast %cst_27 : f32 to vector<1x256xf32>
    %92 = arith.mulf %3, %91 : vector<1x256xf32>
    %93 = math.floor %90 : vector<1x256xf32>
    %94 = math.floor %92 : vector<1x256xf32>
    %95 = arith.subf %90, %93 : vector<1x256xf32>
    %96 = arith.subf %92, %94 : vector<1x256xf32>
    %97 = arith.fptosi %93 : vector<1x256xf32> to vector<1x256xi32>
    %98 = arith.fptosi %94 : vector<1x256xf32> to vector<1x256xi32>
    %cst_28 = arith.constant 1.000000e+00 : f32
    %99 = vector.broadcast %cst_28 : f32 to vector<1x256xf32>
    %100 = arith.subf %99, %95 : vector<1x256xf32>
    %cst_29 = arith.constant 1.000000e+00 : f32
    %101 = vector.broadcast %cst_29 : f32 to vector<1x256xf32>
    %102 = arith.subf %101, %96 : vector<1x256xf32>
    %103 = arith.mulf %100, %102 : vector<1x256xf32>
    %104 = arith.mulf %95, %102 : vector<1x256xf32>
    %105 = arith.mulf %100, %96 : vector<1x256xf32>
    %106 = arith.mulf %95, %96 : vector<1x256xf32>
    %c0_i32_30 = arith.constant 0 : i32
    %107 = vector.broadcast %c0_i32_30 : i32 to vector<1x256xi32>
    %108 = arith.addi %97, %107 : vector<1x256xi32>
    %c0_i32_31 = arith.constant 0 : i32
    %109 = vector.broadcast %c0_i32_31 : i32 to vector<1x256xi32>
    %110 = arith.addi %98, %109 : vector<1x256xi32>
    %c-1640531535_i32_32 = arith.constant -1640531535 : i32
    %111 = vector.broadcast %c-1640531535_i32_32 : i32 to vector<1x256xi32>
    %112 = arith.muli %110, %111 : vector<1x256xi32>
    %113 = arith.xori %108, %112 : vector<1x256xi32>
    %c63_i32_33 = arith.constant 63 : i32
    %114 = vector.broadcast %c63_i32_33 : i32 to vector<1x256xi32>
    %115 = arith.andi %113, %114 : vector<1x256xi32>
    %116 = vector.broadcast %115 : vector<1x256xi32> to vector<64x256xi32>
    %117 = arith.cmpi eq, %4, %116 : vector<64x256xi32>
    %cst_34 = arith.constant 0.000000e+00 : f32
    %118 = vector.shape_cast %103 : vector<1x256xf32> to vector<1x256xf32>
    %119 = vector.broadcast %118 : vector<1x256xf32> to vector<64x256xf32>
    %120 = vector.broadcast %cst_34 : f32 to vector<64x256xf32>
    %121 = arith.select %117, %119, %120 : vector<64x256xi1>, vector<64x256xf32>
    %c1_i32_35 = arith.constant 1 : i32
    %122 = vector.broadcast %c1_i32_35 : i32 to vector<1x256xi32>
    %123 = arith.addi %97, %122 : vector<1x256xi32>
    %c0_i32_36 = arith.constant 0 : i32
    %124 = vector.broadcast %c0_i32_36 : i32 to vector<1x256xi32>
    %125 = arith.addi %98, %124 : vector<1x256xi32>
    %c-1640531535_i32_37 = arith.constant -1640531535 : i32
    %126 = vector.broadcast %c-1640531535_i32_37 : i32 to vector<1x256xi32>
    %127 = arith.muli %125, %126 : vector<1x256xi32>
    %128 = arith.xori %123, %127 : vector<1x256xi32>
    %c63_i32_38 = arith.constant 63 : i32
    %129 = vector.broadcast %c63_i32_38 : i32 to vector<1x256xi32>
    %130 = arith.andi %128, %129 : vector<1x256xi32>
    %131 = vector.broadcast %130 : vector<1x256xi32> to vector<64x256xi32>
    %132 = arith.cmpi eq, %4, %131 : vector<64x256xi32>
    %cst_39 = arith.constant 0.000000e+00 : f32
    %133 = vector.shape_cast %104 : vector<1x256xf32> to vector<1x256xf32>
    %134 = vector.broadcast %133 : vector<1x256xf32> to vector<64x256xf32>
    %135 = vector.broadcast %cst_39 : f32 to vector<64x256xf32>
    %136 = arith.select %132, %134, %135 : vector<64x256xi1>, vector<64x256xf32>
    %137 = arith.addf %121, %136 : vector<64x256xf32>
    %c0_i32_40 = arith.constant 0 : i32
    %138 = vector.broadcast %c0_i32_40 : i32 to vector<1x256xi32>
    %139 = arith.addi %97, %138 : vector<1x256xi32>
    %c1_i32_41 = arith.constant 1 : i32
    %140 = vector.broadcast %c1_i32_41 : i32 to vector<1x256xi32>
    %141 = arith.addi %98, %140 : vector<1x256xi32>
    %c-1640531535_i32_42 = arith.constant -1640531535 : i32
    %142 = vector.broadcast %c-1640531535_i32_42 : i32 to vector<1x256xi32>
    %143 = arith.muli %141, %142 : vector<1x256xi32>
    %144 = arith.xori %139, %143 : vector<1x256xi32>
    %c63_i32_43 = arith.constant 63 : i32
    %145 = vector.broadcast %c63_i32_43 : i32 to vector<1x256xi32>
    %146 = arith.andi %144, %145 : vector<1x256xi32>
    %147 = vector.broadcast %146 : vector<1x256xi32> to vector<64x256xi32>
    %148 = arith.cmpi eq, %4, %147 : vector<64x256xi32>
    %cst_44 = arith.constant 0.000000e+00 : f32
    %149 = vector.shape_cast %105 : vector<1x256xf32> to vector<1x256xf32>
    %150 = vector.broadcast %149 : vector<1x256xf32> to vector<64x256xf32>
    %151 = vector.broadcast %cst_44 : f32 to vector<64x256xf32>
    %152 = arith.select %148, %150, %151 : vector<64x256xi1>, vector<64x256xf32>
    %153 = arith.addf %137, %152 : vector<64x256xf32>
    %c1_i32_45 = arith.constant 1 : i32
    %154 = vector.broadcast %c1_i32_45 : i32 to vector<1x256xi32>
    %155 = arith.addi %97, %154 : vector<1x256xi32>
    %c1_i32_46 = arith.constant 1 : i32
    %156 = vector.broadcast %c1_i32_46 : i32 to vector<1x256xi32>
    %157 = arith.addi %98, %156 : vector<1x256xi32>
    %c-1640531535_i32_47 = arith.constant -1640531535 : i32
    %158 = vector.broadcast %c-1640531535_i32_47 : i32 to vector<1x256xi32>
    %159 = arith.muli %157, %158 : vector<1x256xi32>
    %160 = arith.xori %155, %159 : vector<1x256xi32>
    %c63_i32_48 = arith.constant 63 : i32
    %161 = vector.broadcast %c63_i32_48 : i32 to vector<1x256xi32>
    %162 = arith.andi %160, %161 : vector<1x256xi32>
    %163 = vector.broadcast %162 : vector<1x256xi32> to vector<64x256xi32>
    %164 = arith.cmpi eq, %4, %163 : vector<64x256xi32>
    %cst_49 = arith.constant 0.000000e+00 : f32
    %165 = vector.shape_cast %106 : vector<1x256xf32> to vector<1x256xf32>
    %166 = vector.broadcast %165 : vector<1x256xf32> to vector<64x256xf32>
    %167 = vector.broadcast %cst_49 : f32 to vector<64x256xf32>
    %168 = arith.select %164, %166, %167 : vector<64x256xi1>, vector<64x256xf32>
    %169 = arith.addf %153, %168 : vector<64x256xf32>
    %c0_50 = arith.constant 0 : index
    %c1 = arith.constant 1 : index
    %c0_51 = arith.constant 0 : index
    %c0_52 = arith.constant 0 : index
    %170 = vector.load %arg3[%c0_50, %c1, %c0_51, %c0_52] : memref<1x4x3x64xf32, #tpu.memory_space<vmem>>, vector<1x1x3x64xf32>
    %171 = vector.shape_cast %170 : vector<1x1x3x64xf32> to vector<3x64xf32>
    %cst_53 = arith.constant dense<0.000000e+00> : vector<3x256xf32>
    %172 = tpu.matmul %171, %169, %cst_53 {dimension_numbers = #tpu.dot_dimension_numbers<[1], [0], [0], [1], [0, 0, 1, 1], [], []>} : vector<3x64xf32>, vector<64x256xf32>, vector<3x256xf32> -> vector<3x256xf32>
    %173 = arith.addf %88, %172 : vector<3x256xf32>
    %cst_54 = arith.constant 8.000000e+00 : f32
    %174 = vector.broadcast %cst_54 : f32 to vector<1x256xf32>
    %175 = arith.mulf %2, %174 : vector<1x256xf32>
    %cst_55 = arith.constant 8.000000e+00 : f32
    %176 = vector.broadcast %cst_55 : f32 to vector<1x256xf32>
    %177 = arith.mulf %3, %176 : vector<1x256xf32>
    %178 = math.floor %175 : vector<1x256xf32>
    %179 = math.floor %177 : vector<1x256xf32>
    %180 = arith.subf %175, %178 : vector<1x256xf32>
    %181 = arith.subf %177, %179 : vector<1x256xf32>
    %182 = arith.fptosi %178 : vector<1x256xf32> to vector<1x256xi32>
    %183 = arith.fptosi %179 : vector<1x256xf32> to vector<1x256xi32>
    %cst_56 = arith.constant 1.000000e+00 : f32
    %184 = vector.broadcast %cst_56 : f32 to vector<1x256xf32>
    %185 = arith.subf %184, %180 : vector<1x256xf32>
    %cst_57 = arith.constant 1.000000e+00 : f32
    %186 = vector.broadcast %cst_57 : f32 to vector<1x256xf32>
    %187 = arith.subf %186, %181 : vector<1x256xf32>
    %188 = arith.mulf %185, %187 : vector<1x256xf32>
    %189 = arith.mulf %180, %187 : vector<1x256xf32>
    %190 = arith.mulf %185, %181 : vector<1x256xf32>
    %191 = arith.mulf %180, %181 : vector<1x256xf32>
    %c0_i32_58 = arith.constant 0 : i32
    %192 = vector.broadcast %c0_i32_58 : i32 to vector<1x256xi32>
    %193 = arith.addi %182, %192 : vector<1x256xi32>
    %c0_i32_59 = arith.constant 0 : i32
    %194 = vector.broadcast %c0_i32_59 : i32 to vector<1x256xi32>
    %195 = arith.addi %183, %194 : vector<1x256xi32>
    %c-1640531535_i32_60 = arith.constant -1640531535 : i32
    %196 = vector.broadcast %c-1640531535_i32_60 : i32 to vector<1x256xi32>
    %197 = arith.muli %195, %196 : vector<1x256xi32>
    %198 = arith.xori %193, %197 : vector<1x256xi32>
    %c63_i32_61 = arith.constant 63 : i32
    %199 = vector.broadcast %c63_i32_61 : i32 to vector<1x256xi32>
    %200 = arith.andi %198, %199 : vector<1x256xi32>
    %201 = vector.broadcast %200 : vector<1x256xi32> to vector<64x256xi32>
    %202 = arith.cmpi eq, %4, %201 : vector<64x256xi32>
    %cst_62 = arith.constant 0.000000e+00 : f32
    %203 = vector.shape_cast %188 : vector<1x256xf32> to vector<1x256xf32>
    %204 = vector.broadcast %203 : vector<1x256xf32> to vector<64x256xf32>
    %205 = vector.broadcast %cst_62 : f32 to vector<64x256xf32>
    %206 = arith.select %202, %204, %205 : vector<64x256xi1>, vector<64x256xf32>
    %c1_i32_63 = arith.constant 1 : i32
    %207 = vector.broadcast %c1_i32_63 : i32 to vector<1x256xi32>
    %208 = arith.addi %182, %207 : vector<1x256xi32>
    %c0_i32_64 = arith.constant 0 : i32
    %209 = vector.broadcast %c0_i32_64 : i32 to vector<1x256xi32>
    %210 = arith.addi %183, %209 : vector<1x256xi32>
    %c-1640531535_i32_65 = arith.constant -1640531535 : i32
    %211 = vector.broadcast %c-1640531535_i32_65 : i32 to vector<1x256xi32>
    %212 = arith.muli %210, %211 : vector<1x256xi32>
    %213 = arith.xori %208, %212 : vector<1x256xi32>
    %c63_i32_66 = arith.constant 63 : i32
    %214 = vector.broadcast %c63_i32_66 : i32 to vector<1x256xi32>
    %215 = arith.andi %213, %214 : vector<1x256xi32>
    %216 = vector.broadcast %215 : vector<1x256xi32> to vector<64x256xi32>
    %217 = arith.cmpi eq, %4, %216 : vector<64x256xi32>
    %cst_67 = arith.constant 0.000000e+00 : f32
    %218 = vector.shape_cast %189 : vector<1x256xf32> to vector<1x256xf32>
    %219 = vector.broadcast %218 : vector<1x256xf32> to vector<64x256xf32>
    %220 = vector.broadcast %cst_67 : f32 to vector<64x256xf32>
    %221 = arith.select %217, %219, %220 : vector<64x256xi1>, vector<64x256xf32>
    %222 = arith.addf %206, %221 : vector<64x256xf32>
    %c0_i32_68 = arith.constant 0 : i32
    %223 = vector.broadcast %c0_i32_68 : i32 to vector<1x256xi32>
    %224 = arith.addi %182, %223 : vector<1x256xi32>
    %c1_i32_69 = arith.constant 1 : i32
    %225 = vector.broadcast %c1_i32_69 : i32 to vector<1x256xi32>
    %226 = arith.addi %183, %225 : vector<1x256xi32>
    %c-1640531535_i32_70 = arith.constant -1640531535 : i32
    %227 = vector.broadcast %c-1640531535_i32_70 : i32 to vector<1x256xi32>
    %228 = arith.muli %226, %227 : vector<1x256xi32>
    %229 = arith.xori %224, %228 : vector<1x256xi32>
    %c63_i32_71 = arith.constant 63 : i32
    %230 = vector.broadcast %c63_i32_71 : i32 to vector<1x256xi32>
    %231 = arith.andi %229, %230 : vector<1x256xi32>
    %232 = vector.broadcast %231 : vector<1x256xi32> to vector<64x256xi32>
    %233 = arith.cmpi eq, %4, %232 : vector<64x256xi32>
    %cst_72 = arith.constant 0.000000e+00 : f32
    %234 = vector.shape_cast %190 : vector<1x256xf32> to vector<1x256xf32>
    %235 = vector.broadcast %234 : vector<1x256xf32> to vector<64x256xf32>
    %236 = vector.broadcast %cst_72 : f32 to vector<64x256xf32>
    %237 = arith.select %233, %235, %236 : vector<64x256xi1>, vector<64x256xf32>
    %238 = arith.addf %222, %237 : vector<64x256xf32>
    %c1_i32_73 = arith.constant 1 : i32
    %239 = vector.broadcast %c1_i32_73 : i32 to vector<1x256xi32>
    %240 = arith.addi %182, %239 : vector<1x256xi32>
    %c1_i32_74 = arith.constant 1 : i32
    %241 = vector.broadcast %c1_i32_74 : i32 to vector<1x256xi32>
    %242 = arith.addi %183, %241 : vector<1x256xi32>
    %c-1640531535_i32_75 = arith.constant -1640531535 : i32
    %243 = vector.broadcast %c-1640531535_i32_75 : i32 to vector<1x256xi32>
    %244 = arith.muli %242, %243 : vector<1x256xi32>
    %245 = arith.xori %240, %244 : vector<1x256xi32>
    %c63_i32_76 = arith.constant 63 : i32
    %246 = vector.broadcast %c63_i32_76 : i32 to vector<1x256xi32>
    %247 = arith.andi %245, %246 : vector<1x256xi32>
    %248 = vector.broadcast %247 : vector<1x256xi32> to vector<64x256xi32>
    %249 = arith.cmpi eq, %4, %248 : vector<64x256xi32>
    %cst_77 = arith.constant 0.000000e+00 : f32
    %250 = vector.shape_cast %191 : vector<1x256xf32> to vector<1x256xf32>
    %251 = vector.broadcast %250 : vector<1x256xf32> to vector<64x256xf32>
    %252 = vector.broadcast %cst_77 : f32 to vector<64x256xf32>
    %253 = arith.select %249, %251, %252 : vector<64x256xi1>, vector<64x256xf32>
    %254 = arith.addf %238, %253 : vector<64x256xf32>
    %c0_78 = arith.constant 0 : index
    %c2 = arith.constant 2 : index
    %c0_79 = arith.constant 0 : index
    %c0_80 = arith.constant 0 : index
    %255 = vector.load %arg3[%c0_78, %c2, %c0_79, %c0_80] : memref<1x4x3x64xf32, #tpu.memory_space<vmem>>, vector<1x1x3x64xf32>
    %256 = vector.shape_cast %255 : vector<1x1x3x64xf32> to vector<3x64xf32>
    %cst_81 = arith.constant dense<0.000000e+00> : vector<3x256xf32>
    %257 = tpu.matmul %256, %254, %cst_81 {dimension_numbers = #tpu.dot_dimension_numbers<[1], [0], [0], [1], [0, 0, 1, 1], [], []>} : vector<3x64xf32>, vector<64x256xf32>, vector<3x256xf32> -> vector<3x256xf32>
    %258 = arith.addf %173, %257 : vector<3x256xf32>
    %cst_82 = arith.constant 1.600000e+01 : f32
    %259 = vector.broadcast %cst_82 : f32 to vector<1x256xf32>
    %260 = arith.mulf %2, %259 : vector<1x256xf32>
    %cst_83 = arith.constant 1.600000e+01 : f32
    %261 = vector.broadcast %cst_83 : f32 to vector<1x256xf32>
    %262 = arith.mulf %3, %261 : vector<1x256xf32>
    %263 = math.floor %260 : vector<1x256xf32>
    %264 = math.floor %262 : vector<1x256xf32>
    %265 = arith.subf %260, %263 : vector<1x256xf32>
    %266 = arith.subf %262, %264 : vector<1x256xf32>
    %267 = arith.fptosi %263 : vector<1x256xf32> to vector<1x256xi32>
    %268 = arith.fptosi %264 : vector<1x256xf32> to vector<1x256xi32>
    %cst_84 = arith.constant 1.000000e+00 : f32
    %269 = vector.broadcast %cst_84 : f32 to vector<1x256xf32>
    %270 = arith.subf %269, %265 : vector<1x256xf32>
    %cst_85 = arith.constant 1.000000e+00 : f32
    %271 = vector.broadcast %cst_85 : f32 to vector<1x256xf32>
    %272 = arith.subf %271, %266 : vector<1x256xf32>
    %273 = arith.mulf %270, %272 : vector<1x256xf32>
    %274 = arith.mulf %265, %272 : vector<1x256xf32>
    %275 = arith.mulf %270, %266 : vector<1x256xf32>
    %276 = arith.mulf %265, %266 : vector<1x256xf32>
    %c0_i32_86 = arith.constant 0 : i32
    %277 = vector.broadcast %c0_i32_86 : i32 to vector<1x256xi32>
    %278 = arith.addi %267, %277 : vector<1x256xi32>
    %c0_i32_87 = arith.constant 0 : i32
    %279 = vector.broadcast %c0_i32_87 : i32 to vector<1x256xi32>
    %280 = arith.addi %268, %279 : vector<1x256xi32>
    %c-1640531535_i32_88 = arith.constant -1640531535 : i32
    %281 = vector.broadcast %c-1640531535_i32_88 : i32 to vector<1x256xi32>
    %282 = arith.muli %280, %281 : vector<1x256xi32>
    %283 = arith.xori %278, %282 : vector<1x256xi32>
    %c63_i32_89 = arith.constant 63 : i32
    %284 = vector.broadcast %c63_i32_89 : i32 to vector<1x256xi32>
    %285 = arith.andi %283, %284 : vector<1x256xi32>
    %286 = vector.broadcast %285 : vector<1x256xi32> to vector<64x256xi32>
    %287 = arith.cmpi eq, %4, %286 : vector<64x256xi32>
    %cst_90 = arith.constant 0.000000e+00 : f32
    %288 = vector.shape_cast %273 : vector<1x256xf32> to vector<1x256xf32>
    %289 = vector.broadcast %288 : vector<1x256xf32> to vector<64x256xf32>
    %290 = vector.broadcast %cst_90 : f32 to vector<64x256xf32>
    %291 = arith.select %287, %289, %290 : vector<64x256xi1>, vector<64x256xf32>
    %c1_i32_91 = arith.constant 1 : i32
    %292 = vector.broadcast %c1_i32_91 : i32 to vector<1x256xi32>
    %293 = arith.addi %267, %292 : vector<1x256xi32>
    %c0_i32_92 = arith.constant 0 : i32
    %294 = vector.broadcast %c0_i32_92 : i32 to vector<1x256xi32>
    %295 = arith.addi %268, %294 : vector<1x256xi32>
    %c-1640531535_i32_93 = arith.constant -1640531535 : i32
    %296 = vector.broadcast %c-1640531535_i32_93 : i32 to vector<1x256xi32>
    %297 = arith.muli %295, %296 : vector<1x256xi32>
    %298 = arith.xori %293, %297 : vector<1x256xi32>
    %c63_i32_94 = arith.constant 63 : i32
    %299 = vector.broadcast %c63_i32_94 : i32 to vector<1x256xi32>
    %300 = arith.andi %298, %299 : vector<1x256xi32>
    %301 = vector.broadcast %300 : vector<1x256xi32> to vector<64x256xi32>
    %302 = arith.cmpi eq, %4, %301 : vector<64x256xi32>
    %cst_95 = arith.constant 0.000000e+00 : f32
    %303 = vector.shape_cast %274 : vector<1x256xf32> to vector<1x256xf32>
    %304 = vector.broadcast %303 : vector<1x256xf32> to vector<64x256xf32>
    %305 = vector.broadcast %cst_95 : f32 to vector<64x256xf32>
    %306 = arith.select %302, %304, %305 : vector<64x256xi1>, vector<64x256xf32>
    %307 = arith.addf %291, %306 : vector<64x256xf32>
    %c0_i32_96 = arith.constant 0 : i32
    %308 = vector.broadcast %c0_i32_96 : i32 to vector<1x256xi32>
    %309 = arith.addi %267, %308 : vector<1x256xi32>
    %c1_i32_97 = arith.constant 1 : i32
    %310 = vector.broadcast %c1_i32_97 : i32 to vector<1x256xi32>
    %311 = arith.addi %268, %310 : vector<1x256xi32>
    %c-1640531535_i32_98 = arith.constant -1640531535 : i32
    %312 = vector.broadcast %c-1640531535_i32_98 : i32 to vector<1x256xi32>
    %313 = arith.muli %311, %312 : vector<1x256xi32>
    %314 = arith.xori %309, %313 : vector<1x256xi32>
    %c63_i32_99 = arith.constant 63 : i32
    %315 = vector.broadcast %c63_i32_99 : i32 to vector<1x256xi32>
    %316 = arith.andi %314, %315 : vector<1x256xi32>
    %317 = vector.broadcast %316 : vector<1x256xi32> to vector<64x256xi32>
    %318 = arith.cmpi eq, %4, %317 : vector<64x256xi32>
    %cst_100 = arith.constant 0.000000e+00 : f32
    %319 = vector.shape_cast %275 : vector<1x256xf32> to vector<1x256xf32>
    %320 = vector.broadcast %319 : vector<1x256xf32> to vector<64x256xf32>
    %321 = vector.broadcast %cst_100 : f32 to vector<64x256xf32>
    %322 = arith.select %318, %320, %321 : vector<64x256xi1>, vector<64x256xf32>
    %323 = arith.addf %307, %322 : vector<64x256xf32>
    %c1_i32_101 = arith.constant 1 : i32
    %324 = vector.broadcast %c1_i32_101 : i32 to vector<1x256xi32>
    %325 = arith.addi %267, %324 : vector<1x256xi32>
    %c1_i32_102 = arith.constant 1 : i32
    %326 = vector.broadcast %c1_i32_102 : i32 to vector<1x256xi32>
    %327 = arith.addi %268, %326 : vector<1x256xi32>
    %c-1640531535_i32_103 = arith.constant -1640531535 : i32
    %328 = vector.broadcast %c-1640531535_i32_103 : i32 to vector<1x256xi32>
    %329 = arith.muli %327, %328 : vector<1x256xi32>
    %330 = arith.xori %325, %329 : vector<1x256xi32>
    %c63_i32_104 = arith.constant 63 : i32
    %331 = vector.broadcast %c63_i32_104 : i32 to vector<1x256xi32>
    %332 = arith.andi %330, %331 : vector<1x256xi32>
    %333 = vector.broadcast %332 : vector<1x256xi32> to vector<64x256xi32>
    %334 = arith.cmpi eq, %4, %333 : vector<64x256xi32>
    %cst_105 = arith.constant 0.000000e+00 : f32
    %335 = vector.shape_cast %276 : vector<1x256xf32> to vector<1x256xf32>
    %336 = vector.broadcast %335 : vector<1x256xf32> to vector<64x256xf32>
    %337 = vector.broadcast %cst_105 : f32 to vector<64x256xf32>
    %338 = arith.select %334, %336, %337 : vector<64x256xi1>, vector<64x256xf32>
    %339 = arith.addf %323, %338 : vector<64x256xf32>
    %c0_106 = arith.constant 0 : index
    %c3 = arith.constant 3 : index
    %c0_107 = arith.constant 0 : index
    %c0_108 = arith.constant 0 : index
    %340 = vector.load %arg3[%c0_106, %c3, %c0_107, %c0_108] : memref<1x4x3x64xf32, #tpu.memory_space<vmem>>, vector<1x1x3x64xf32>
    %341 = vector.shape_cast %340 : vector<1x1x3x64xf32> to vector<3x64xf32>
    %cst_109 = arith.constant dense<0.000000e+00> : vector<3x256xf32>
    %342 = tpu.matmul %341, %339, %cst_109 {dimension_numbers = #tpu.dot_dimension_numbers<[1], [0], [0], [1], [0, 0, 1, 1], [], []>} : vector<3x64xf32>, vector<64x256xf32>, vector<3x256xf32> -> vector<3x256xf32>
    %343 = arith.addf %258, %342 : vector<3x256xf32>
    %c0_110 = arith.constant 0 : index
    %c0_111 = arith.constant 0 : index
    %344 = vector.load %arg4[%c0_110, %c0_111] : memref<3x1xf32, #tpu.memory_space<vmem>>, vector<3x1xf32>
    %345 = vector.broadcast %344 : vector<3x1xf32> to vector<3x256xf32>
    %346 = arith.addf %343, %345 : vector<3x256xf32>
    %c0_112 = arith.constant 0 : index
    %c0_113 = arith.constant 0 : index
    %c0_114 = arith.constant 0 : index
    %347 = vector.load %arg5[%c0_112, %c0_113, %c0_114] : memref<1x3x256xf32, #tpu.memory_space<vmem>>, vector<1x3x256xf32>
    %348 = vector.shape_cast %347 : vector<1x3x256xf32> to vector<3x256xf32>
    %349 = vector.shape_cast %346 : vector<3x256xf32> to vector<1x3x256xf32>
    tpu.vector_store %arg5[%c0_112, %c0_113, %c0_114], %349 {strides = array<i32>} : memref<1x3x256xf32, #tpu.memory_space<vmem>>, vector<1x3x256xf32>,
    return
  }
  func.func @transform_0(%arg0: i32, %arg1: i32) -> (i32, i32, i32) {
    %c0_i32 = arith.constant 0 : i32
    %c0_i32_0 = arith.constant 0 : i32
    return %arg0, %c0_i32, %arg1 : i32, i32, i32
  }
  func.func @transform_1(%arg0: i32, %arg1: i32) -> (i32, i32, i32, i32) {
    %c0_i32 = arith.constant 0 : i32
    %c0_i32_0 = arith.constant 0 : i32
    %c0_i32_1 = arith.constant 0 : i32
    %c0_i32_2 = arith.constant 0 : i32
    return %arg0, %c0_i32, %c0_i32_0, %c0_i32_1 : i32, i32, i32, i32
  }
  func.func @transform_2(%arg0: i32, %arg1: i32) -> (i32, i32) {
    %c0_i32 = arith.constant 0 : i32
    %c0_i32_0 = arith.constant 0 : i32
    %c0_i32_1 = arith.constant 0 : i32
    return %c0_i32, %c0_i32_0 : i32, i32
  }
  func.func @transform_3(%arg0: i32, %arg1: i32) -> (i32, i32, i32) {
    %c0_i32 = arith.constant 0 : i32
    %c0_i32_0 = arith.constant 0 : i32
    return %arg0, %c0_i32, %arg1 : i32, i32, i32
  }
}

</mosaic_0001>

<llo_original>
// kernel: tpu_custom_call.1
$region0: #{tpu_custom_call.1}
  #allocation0 [shape = 'u32[]', space=smem, size = 0x4, offset = 0x4, fixed_abs, tag = 'smem constant byte address 0x4 - core index']
  #allocation1 [shape = 'u32[72,128]{1,0:T(1,128)}', space=vmem, size = 0x9000, scoped, tag = 'internal scratch']
  %s0 = inlined_call_operand.vmem [shape: f32[2,2,256], index: 0, kind: input, shape index: {}]
  %s1 = inlined_call_operand.vmem [shape: f32[2,4,3,64], index: 1, kind: input, shape index: {}]
  %s2 = inlined_call_operand.vmem [shape: f32[3,1], index: 2, kind: input, shape index: {}]
  %s3 = inlined_call_operand.vmem [shape: f32[2,3,256], index: 3, kind: output, shape index: {}]
  %s4 = sld [smem:[#allocation0]]
  $region45: #{tpu_custom_call.1} parent=0
    _
  %s6 = ssub.s32 1, %s4
  %s7 = scalar_select 0, %s6, %s4
  loop: start=0, step=1, limit=4
  $region2: #{tpu_custom_call.1} parent=0 // loop_pre_header
    _
  $region3: #{tpu_custom_call.1} parent=0 // loop_header
    %s9 = sphi 0, %s13
    %p10 = scmp.ge.s32.totalorder %s9, 4
    %s16 = sphi 0, %s28
    %s17 = sphi 0, %s24
    %s18 = sphi 0, %s16
    %s19 = sphi 0, %s17
    %s20 = sphi 0, %s18
    %s21 = sphi 0, %s19
    %s33 = sphi 0, %s35
    %s36 = sphi 0, %s33
    %s37 = sphi 0, %s36
    %s53 = sphi 0, %s37
    %s59 = sphi 0, %s61
    %s62 = sphi 0, %s59
    %s63 = sphi 0, %s62
    %s79 = sphi 0, %s63
    %s83 = sphi 0, %s83
    %s85 = sphi 0, %s83
    %s86 = sphi 0, %s85
    %s100 = sphi 0, %s86
    %s108 = sphi 0, %s110
    %s111 = sphi 0, %s108
    %s112 = sphi 0, %s111
    %s128 = sphi 0, %s112
  $region4: #{tpu_custom_call.1} parent=0 // loop_header_branch
    %12 = sbr.rel (%p10) target = $region8
  $region5: #{tpu_custom_call.1} parent=0 // loop_body
    %s14 = ssub.s32 %s9, 1
    %s15 = ssub.s32 %s9, 2
    %s22 = sadd.s32 1, %s17
    %p23 = scmp.ge.s32.totalorder %s22, 1
    %s24 = scalar_select %p23, 0, %s22
    %s25 = sadd.s32 1, %s16
    %s26 = scalar_select %p23, %s25, %s16
    %p27 = scmp.ge.s32.totalorder %s26, 2
    %s28 = scalar_select %p27, 0, %s26
    %s29 = ssub.s32 %s16, %s28
    %s30 = ssub.s32 %s17, %s24
    %s31 = sor.u32 %s29, %s30
    %p32 = scmp.eq.s32.totalorder %s31, 0
    %s34 = sadd.s32 %s33, 1
    %s35 = scalar_select %p32, %s33, %s34
    %p38 = pneg %p32
    %p39 = scmp.eq.s32.totalorder %s9, 1
    %p40 = por %p38, %p39
    %p41 = scmp.ne.s32.totalorder %s33, %s36
    %p42 = scmp.eq.s32.totalorder %s9, 0
    %p43 = por %p41, %p42
    %p44 = scmp.ne.s32.totalorder %s33, %s36
    %p45 = scmp.eq.s32.totalorder %s14, 1
    %p46 = por %p44, %p45
    %p47 = scmp.ne.s32.totalorder %s36, %s37
    %p48 = scmp.eq.s32.totalorder %s14, 0
    %p49 = por %p47, %p48
    %p50 = scmp.ne.s32.totalorder %s36, %s37
    %p51 = scmp.eq.s32.totalorder %s15, 1
    %p52 = por %p50, %p51
    %p54 = scmp.ne.s32.totalorder %s37, %s53
    %p55 = scmp.eq.s32.totalorder %s15, 0
    %p56 = por %p54, %p55
    %s57 = ssub.s32 %s16, %s28
    %p58 = scmp.eq.s32.totalorder %s57, 0
    %s60 = sadd.s32 %s59, 1
    %s61 = scalar_select %p58, %s59, %s60
    %p64 = pneg %p58
    %p65 = scmp.eq.s32.totalorder %s9, 1
    %p66 = por %p64, %p65
    %p67 = scmp.ne.s32.totalorder %s59, %s62
    %p68 = scmp.eq.s32.totalorder %s9, 0
    %p69 = por %p67, %p68
    %p70 = scmp.ne.s32.totalorder %s59, %s62
    %p71 = scmp.eq.s32.totalorder %s14, 1
    %p72 = por %p70, %p71
    %p73 = scmp.ne.s32.totalorder %s62, %s63
    %p74 = scmp.eq.s32.totalorder %s14, 0
    %p75 = por %p73, %p74
    %p76 = scmp.ne.s32.totalorder %s62, %s63
    %p77 = scmp.eq.s32.totalorder %s15, 1
    %p78 = por %p76, %p77
    %p80 = scmp.ne.s32.totalorder %s63, %s79
    %p81 = scmp.eq.s32.totalorder %s15, 0
    %p82 = por %p80, %p81
    %s84 = sadd.s32 %s83, 1
    %p87 = scmp.eq.s32.totalorder %s9, 1
    %p88 = scmp.ne.s32.totalorder %s83, %s85
    %p89 = scmp.eq.s32.totalorder %s9, 0
    %p90 = por %p88, %p89
    %p91 = scmp.ne.s32.totalorder %s83, %s85
    %p92 = scmp.eq.s32.totalorder %s14, 1
    %p93 = por %p91, %p92
    %p94 = scmp.ne.s32.totalorder %s85, %s86
    %p95 = scmp.eq.s32.totalorder %s14, 0
    %p96 = por %p94, %p95
    %p97 = scmp.ne.s32.totalorder %s85, %s86
    %p98 = scmp.eq.s32.totalorder %s15, 1
    %p99 = por %p97, %p98
    %p101 = scmp.ne.s32.totalorder %s86, %s100
    %p102 = scmp.eq.s32.totalorder %s15, 0
    %p103 = por %p101, %p102
    %s104 = ssub.s32 %s16, %s28
    %s105 = ssub.s32 %s17, %s24
    %s106 = sor.u32 %s104, %s105
    %p107 = scmp.eq.s32.totalorder %s106, 0
    %s109 = sadd.s32 %s108, 1
    %s110 = scalar_select %p107, %s108, %s109
    %p113 = pneg %p107
    %p114 = scmp.eq.s32.totalorder %s9, 1
    %p115 = por %p113, %p114
    %p116 = scmp.ne.s32.totalorder %s108, %s111
    %p117 = scmp.eq.s32.totalorder %s9, 0
    %p118 = por %p116, %p117
    %p119 = scmp.ne.s32.totalorder %s108, %s111
    %p120 = scmp.eq.s32.totalorder %s14, 1
    %p121 = por %p119, %p120
    %p122 = scmp.ne.s32.totalorder %s111, %s112
    %p123 = scmp.eq.s32.totalorder %s14, 0
    %p124 = por %p122, %p123
    %p125 = scmp.ne.s32.totalorder %s111, %s112
    %p126 = scmp.eq.s32.totalorder %s15, 1
    %p127 = por %p125, %p126
    %p129 = scmp.ne.s32.totalorder %s112, %s128
    %p130 = scmp.eq.s32.totalorder %s15, 0
    %p131 = por %p129, %p130
    %p132 = scmp.le.s32.totalorder 1, %s9
    %p133 = scmp.lt.s32.totalorder %s9, 3
    %p134 = pnand %p132, %p133
    %p135 = pneg %p134
    // Predicated region
    $region9: #{tpu_custom_call.1} parent=5 // pred_check
      _
    $region10: #{tpu_custom_call.1} parent=5 // pred_check_branch
      %137 = sbr.rel (%p134) target = $region12
    $region11: #{tpu_custom_call.1} parent=5 // pred_region
      %s138 = ssub.s32 %s9, 1
      // Predicated region
      $region13: #{tpu_custom_call.1} parent=11 // pred_check
        %p139 = pneg %p96
      $region14: #{tpu_custom_call.1} parent=11 // pred_check_branch
        %141 = sbr.rel (%p139) target = $region16
      $region15: #{tpu_custom_call.1} parent=11 // pred_region
        _
      $region16: #{tpu_custom_call.1} parent=11 // pred_fallthru
        _
    $region12: #{tpu_custom_call.1} parent=5 // pred_fallthru
      _
    %p142 = scmp.lt.s32.totalorder %s9, 2
    // Predicated region
    $region17: #{tpu_custom_call.1} parent=5 // pred_check
      %p143 = pneg %p142
    $region18: #{tpu_custom_call.1} parent=5 // pred_check_branch
      %145 = sbr.rel (%p143) target = $region20
    $region19: #{tpu_custom_call.1} parent=5 // pred_region
      // Predicated region
      $region21: #{tpu_custom_call.1} parent=19 // pred_check
        %p146 = pneg %p43
      $region22: #{tpu_custom_call.1} parent=19 // pred_check_branch
        %148 = sbr.rel (%p146) target = $region24
      $region23: #{tpu_custom_call.1} parent=19 // pred_region
        %s149 = smul.u32 2, %s17
        %p150 = scmp.lt.s32.totalorder %s16, 1
        %s151 = scalar_select %p150, %s16, 1
        %p152 = scmp.lt.s32.totalorder %s149, 1
        %s153 = scalar_select %p152, %s149, 1
        %s154 = smul.addr %s151, 2
        %s155 = sadd.s32 %s153, %s154
        %s156 = smul.addr %s155, 2
        %s157 = scalar_lea.vmem %s0, %s156
        %s158 = smul.u32 2, %s17
      $region24: #{tpu_custom_call.1} parent=19 // pred_fallthru
        _
      // Predicated region
      $region25: #{tpu_custom_call.1} parent=19 // pred_check
        %p159 = pneg %p69
      $region26: #{tpu_custom_call.1} parent=19 // pred_check_branch
        %161 = sbr.rel (%p159) target = $region28
      $region27: #{tpu_custom_call.1} parent=19 // pred_region
        %p162 = scmp.lt.s32.totalorder %s16, 1
        %s163 = scalar_select %p162, %s16, 1
        %s164 = smul.addr %s163, 4
        %s165 = smul.addr %s164, 4
        %s166 = scalar_lea.vmem %s1, %s165
      $region28: #{tpu_custom_call.1} parent=19 // pred_fallthru
        _
    $region20: #{tpu_custom_call.1} parent=5 // pred_fallthru
      _
    %p167 = scmp.le.s32.totalorder 1, %s9
    %p168 = scmp.lt.s32.totalorder %s9, 3
    %p169 = pnand %p167, %p168
    %p170 = pneg %p169
    // Predicated region
    $region29: #{tpu_custom_call.1} parent=5 // pred_check
      _
    $region30: #{tpu_custom_call.1} parent=5 // pred_check_branch
      %172 = sbr.rel (%p169) target = $region32
    $region31: #{tpu_custom_call.1} parent=5 // pred_region
      %s173 = ssub.s32 %s9, 1
      %s174 = smul.u32 2, %s19
      %p175 = scmp.lt.s32.totalorder %s18, 1
      %s176 = scalar_select %p175, %s18, 1
      %p177 = scmp.lt.s32.totalorder %s174, 1
      %s178 = scalar_select %p177, %s174, 1
      %s179 = smul.addr %s176, 2
      %s180 = sadd.s32 %s178, %s179
      %s181 = smul.addr %s180, 2
      %s182 = scalar_lea.vmem %s0, %s181
      %p183 = pneg %p49
      %p184 = pneg %p46
      %p185 = scmp.lt.s32.totalorder %s18, 1
      %s186 = scalar_select %p185, %s18, 1
      %s187 = smul.addr %s186, 4
      %s188 = smul.addr %s187, 4
      %s189 = scalar_lea.vmem %s1, %s188
      %p190 = pneg %p75
      %p191 = pneg %p72
      %p192 = pneg %p96
      %p193 = pneg %p93
      %p194 = pneg %p124
      %p195 = pneg %p121
      %s196 = smul.u32 2, %s19
      %p197 = scmp.lt.s32.totalorder %s18, 1
      %s198 = scalar_select %p197, %s18, 1
      %p199 = scmp.lt.s32.totalorder %s196, 1
      %s200 = scalar_select %p199, %s196, 1
      %s201 = smul.addr %s198, 2
      %s202 = sadd.s32 %s200, %s201
      %s203 = smul.addr %s202, 4
      %s204 = scalar_lea.vmem %s3, %s203
      %s205 = smul.u32 2, %s19
      %p206 = scmp.lt.s32.totalorder %s18, 1
      %s207 = scalar_select %p206, %s18, 1
      %p208 = scmp.lt.s32.totalorder %s205, 1
      %s209 = scalar_select %p208, %s205, 1
      %s210 = smul.addr %s207, 2
      %s211 = sadd.s32 %s209, %s210
      %s212 = smul.addr %s211, 2
      %s213 = scalar_lea.vmem %s0, %s212
      %s214 = smul.u32 2, %s19
      %p215 = scmp.lt.s32.totalorder %s18, 1
      %s216 = scalar_select %p215, %s18, 1
      %s217 = smul.addr %s216, 4
      %s218 = smul.addr %s217, 4
      %s219 = scalar_lea.vmem %s1, %s218
      %s220 = smul.u32 2, %s19
      %p221 = scmp.lt.s32.totalorder %s18, 1
      %s222 = scalar_select %p221, %s18, 1
      %p223 = scmp.lt.s32.totalorder %s220, 1
      %s224 = scalar_select %p223, %s220, 1
      %s225 = smul.addr %s222, 2
      %s226 = sadd.s32 %s224, %s225
      %s227 = smul.addr %s226, 4
      %s228 = scalar_lea.vmem %s3, %s227
      %s229 = smul.u32 2, %s19
      %v230 = vld [vmem:[%s213] sm:$0xf]
      %v231 = vlaneseq
      %v232 = vshrl.u32 %v231, 7
      %v233 = vadd.s32 %v232, 8
      %v234 = vadd.s32 %v232, 16
      %v235 = vadd.s32 %v232, 24
      %v236 = vadd.s32 %v232, 32
      %v237 = vadd.s32 %v232, 40
      %v238 = vadd.s32 %v232, 48
      %v239 = vadd.s32 %v232, 56
      %v240 = vmul.f32 %v230, 2.0
      %v241 = vfloor.f32 %v240
      %v242 = vsub.f32 %v240, %v241
      %v243 = vcvt.f32.s32.to.zero.pseudo %v241
      %v244 = vsub.f32 1.0, %v242
      %v246 = vrot.slane %v244, 7
      %v247 = vrot.slane %v246, 2
      %v249 = vmul.f32 %v244, %v247
      %v250 = vmul.f32 %v242, %v247
      %v252 = vrot.slane %v242, 7
      %v253 = vrot.slane %v252, 2
      %v255 = vmul.f32 %v244, %v253
      %v256 = vmul.f32 %v242, %v253
      %v257 = vmul.u32 %v243, 2654435761
      %v258 = vrot.slane %v257, 7
      %v259 = vrot.slane %v258, 2
      %v260 = vxor.u32 %v243, %v259
      %v261 = vand.u32 %v260, 63
      %v262 = vperm.slane %v261, 0
      %v263 = vperm.slane %v261, 2
      %v264 = vperm.slane %v262, 0
      %v265 = vperm.slane %v263, 0
      %vm266 = vcmp.eq.s32.totalorder %v232, %v264
      %vm267 = vcmp.eq.s32.totalorder %v232, %v265
      %vm268 = vcmp.eq.s32.totalorder %v233, %v264
      %vm269 = vcmp.eq.s32.totalorder %v233, %v265
      %vm270 = vcmp.eq.s32.totalorder %v234, %v264
      %vm271 = vcmp.eq.s32.totalorder %v234, %v265
      %vm272 = vcmp.eq.s32.totalorder %v235, %v264
      %vm273 = vcmp.eq.s32.totalorder %v235, %v265
      %vm274 = vcmp.eq.s32.totalorder %v236, %v264
      %vm275 = vcmp.eq.s32.totalorder %v236, %v265
      %vm276 = vcmp.eq.s32.totalorder %v237, %v264
      %vm277 = vcmp.eq.s32.totalorder %v237, %v265
      %vm278 = vcmp.eq.s32.totalorder %v238, %v264
      %vm279 = vcmp.eq.s32.totalorder %v238, %v265
      %vm280 = vcmp.eq.s32.totalorder %v239, %v264
      %vm281 = vcmp.eq.s32.totalorder %v239, %v265
      %v283 = vperm.slane %v249, 0
      %v284 = vperm.slane %v249, 2
      %v287 = vperm.slane %v283, 0
      %v288 = vperm.slane %v284, 0
      %v289 = vsel %vm266, %v287, 0.0
      %v290 = vsel %vm267, %v288, 0.0
      %v291 = vsel %vm268, %v287, 0.0
      %v292 = vsel %vm269, %v288, 0.0
      %v293 = vsel %vm270, %v287, 0.0
      %v294 = vsel %vm271, %v288, 0.0
      %v295 = vsel %vm272, %v287, 0.0
      %v296 = vsel %vm273, %v288, 0.0
      %v297 = vsel %vm274, %v287, 0.0
      %v298 = vsel %vm275, %v288, 0.0
      %v299 = vsel %vm276, %v287, 0.0
      %v300 = vsel %vm277, %v288, 0.0
      %v301 = vsel %vm278, %v287, 0.0
      %v302 = vsel %vm279, %v288, 0.0
      %v303 = vsel %vm280, %v287, 0.0
      %v304 = vsel %vm281, %v288, 0.0
      %v305 = vadd.s32 %v243, 1
      %v306 = vxor.u32 %v305, %v259
      %v307 = vand.u32 %v306, 63
      %v308 = vperm.slane %v307, 0
      %v309 = vperm.slane %v307, 2
      %v310 = vperm.slane %v308, 0
      %v311 = vperm.slane %v309, 0
      %vm312 = vcmp.eq.s32.totalorder %v232, %v310
      %vm313 = vcmp.eq.s32.totalorder %v232, %v311
      %vm314 = vcmp.eq.s32.totalorder %v233, %v310
      %vm315 = vcmp.eq.s32.totalorder %v233, %v311
      %vm316 = vcmp.eq.s32.totalorder %v234, %v310
      %vm317 = vcmp.eq.s32.totalorder %v234, %v311
      %vm318 = vcmp.eq.s32.totalorder %v235, %v310
      %vm319 = vcmp.eq.s32.totalorder %v235, %v311
      %vm320 = vcmp.eq.s32.totalorder %v236, %v310
      %vm321 = vcmp.eq.s32.totalorder %v236, %v311
      %vm322 = vcmp.eq.s32.totalorder %v237, %v310
      %vm323 = vcmp.eq.s32.totalorder %v237, %v311
      %vm324 = vcmp.eq.s32.totalorder %v238, %v310
      %vm325 = vcmp.eq.s32.totalorder %v238, %v311
      %vm326 = vcmp.eq.s32.totalorder %v239, %v310
      %vm327 = vcmp.eq.s32.totalorder %v239, %v311
      %v329 = vperm.slane %v250, 0
      %v330 = vperm.slane %v250, 2
      %v333 = vperm.slane %v329, 0
      %v334 = vperm.slane %v330, 0
      %v335 = vsel %vm312, %v333, 0.0
      %v336 = vsel %vm313, %v334, 0.0
      %v337 = vsel %vm314, %v333, 0.0
      %v338 = vsel %vm315, %v334, 0.0
      %v339 = vsel %vm316, %v333, 0.0
      %v340 = vsel %vm317, %v334, 0.0
      %v341 = vsel %vm318, %v333, 0.0
      %v342 = vsel %vm319, %v334, 0.0
      %v343 = vsel %vm320, %v333, 0.0
      %v344 = vsel %vm321, %v334, 0.0
      %v345 = vsel %vm322, %v333, 0.0
      %v346 = vsel %vm323, %v334, 0.0
      %v347 = vsel %vm324, %v333, 0.0
      %v348 = vsel %vm325, %v334, 0.0
      %v349 = vsel %vm326, %v333, 0.0
      %v350 = vsel %vm327, %v334, 0.0
      %v351 = vadd.f32 %v289, %v335
      %v352 = vadd.f32 %v290, %v336
      %v353 = vadd.f32 %v291, %v337
      %v354 = vadd.f32 %v292, %v338
      %v355 = vadd.f32 %v293, %v339
      %v356 = vadd.f32 %v294, %v340
      %v357 = vadd.f32 %v295, %v341
      %v358 = vadd.f32 %v296, %v342
      %v359 = vadd.f32 %v297, %v343
      %v360 = vadd.f32 %v298, %v344
      %v361 = vadd.f32 %v299, %v345
      %v362 = vadd.f32 %v300, %v346
      %v363 = vadd.f32 %v301, %v347
      %v364 = vadd.f32 %v302, %v348
      %v365 = vadd.f32 %v303, %v349
      %v366 = vadd.f32 %v304, %v350
      %v367 = vmul.u32 %v305, 2654435761
      %v368 = vrot.slane %v367, 7
      %v369 = vrot.slane %v368, 2
      %v370 = vxor.u32 %v243, %v369
      %v371 = vand.u32 %v370, 63
      %v372 = vperm.slane %v371, 0
      %v373 = vperm.slane %v371, 2
      %v374 = vperm.slane %v372, 0
      %v375 = vperm.slane %v373, 0
      %vm376 = vcmp.eq.s32.totalorder %v232, %v374
      %vm377 = vcmp.eq.s32.totalorder %v232, %v375
      %vm378 = vcmp.eq.s32.totalorder %v233, %v374
      %vm379 = vcmp.eq.s32.totalorder %v233, %v375
      %vm380 = vcmp.eq.s32.totalorder %v234, %v374
      %vm381 = vcmp.eq.s32.totalorder %v234, %v375
      %vm382 = vcmp.eq.s32.totalorder %v235, %v374
      %vm383 = vcmp.eq.s32.totalorder %v235, %v375
      %vm384 = vcmp.eq.s32.totalorder %v236, %v374
      %vm385 = vcmp.eq.s32.totalorder %v236, %v375
      %vm386 = vcmp.eq.s32.totalorder %v237, %v374
      %vm387 = vcmp.eq.s32.totalorder %v237, %v375
      %vm388 = vcmp.eq.s32.totalorder %v238, %v374
      %vm389 = vcmp.eq.s32.totalorder %v238, %v375
      %vm390 = vcmp.eq.s32.totalorder %v239, %v374
      %vm391 = vcmp.eq.s32.totalorder %v239, %v375
      %v393 = vperm.slane %v255, 0
      %v394 = vperm.slane %v255, 2
      %v397 = vperm.slane %v393, 0
      %v398 = vperm.slane %v394, 0
      %v399 = vsel %vm376, %v397, 0.0
      %v400 = vsel %vm377, %v398, 0.0
      %v401 = vsel %vm378, %v397, 0.0
      %v402 = vsel %vm379, %v398, 0.0
      %v403 = vsel %vm380, %v397, 0.0
      %v404 = vsel %vm381, %v398, 0.0
      %v405 = vsel %vm382, %v397, 0.0
      %v406 = vsel %vm383, %v398, 0.0
      %v407 = vsel %vm384, %v397, 0.0
      %v408 = vsel %vm385, %v398, 0.0
      %v409 = vsel %vm386, %v397, 0.0
      %v410 = vsel %vm387, %v398, 0.0
      %v411 = vsel %vm388, %v397, 0.0
      %v412 = vsel %vm389, %v398, 0.0
      %v413 = vsel %vm390, %v397, 0.0
      %v414 = vsel %vm391, %v398, 0.0
      %v415 = vadd.f32 %v351, %v399
      %v416 = vadd.f32 %v352, %v400
      %v417 = vadd.f32 %v353, %v401
      %v418 = vadd.f32 %v354, %v402
      %v419 = vadd.f32 %v355, %v403
      %v420 = vadd.f32 %v356, %v404
      %v421 = vadd.f32 %v357, %v405
      %v422 = vadd.f32 %v358, %v406
      %v423 = vadd.f32 %v359, %v407
      %v424 = vadd.f32 %v360, %v408
      %v425 = vadd.f32 %v361, %v409
      %v426 = vadd.f32 %v362, %v410
      %v427 = vadd.f32 %v363, %v411
      %v428 = vadd.f32 %v364, %v412
      %v429 = vadd.f32 %v365, %v413
      %v430 = vadd.f32 %v366, %v414
      %v431 = vxor.u32 %v305, %v369
      %v432 = vand.u32 %v431, 63
      %v433 = vperm.slane %v432, 0
      %v434 = vperm.slane %v432, 2
      %v435 = vperm.slane %v433, 0
      %v436 = vperm.slane %v434, 0
      %vm437 = vcmp.eq.s32.totalorder %v232, %v435
      %vm438 = vcmp.eq.s32.totalorder %v232, %v436
      %vm439 = vcmp.eq.s32.totalorder %v233, %v435
      %vm440 = vcmp.eq.s32.totalorder %v233, %v436
      %vm441 = vcmp.eq.s32.totalorder %v234, %v435
      %vm442 = vcmp.eq.s32.totalorder %v234, %v436
      %vm443 = vcmp.eq.s32.totalorder %v235, %v435
      %vm444 = vcmp.eq.s32.totalorder %v235, %v436
      %vm445 = vcmp.eq.s32.totalorder %v236, %v435
      %vm446 = vcmp.eq.s32.totalorder %v236, %v436
      %vm447 = vcmp.eq.s32.totalorder %v237, %v435
      %vm448 = vcmp.eq.s32.totalorder %v237, %v436
      %vm449 = vcmp.eq.s32.totalorder %v238, %v435
      %vm450 = vcmp.eq.s32.totalorder %v238, %v436
      %vm451 = vcmp.eq.s32.totalorder %v239, %v435
      %vm452 = vcmp.eq.s32.totalorder %v239, %v436
      %v454 = vperm.slane %v256, 0
      %v455 = vperm.slane %v256, 2
      %v458 = vperm.slane %v454, 0
      %v459 = vperm.slane %v455, 0
      %v460 = vsel %vm437, %v458, 0.0
      %v461 = vsel %vm438, %v459, 0.0
      %v462 = vsel %vm439, %v458, 0.0
      %v463 = vsel %vm440, %v459, 0.0
      %v464 = vsel %vm441, %v458, 0.0
      %v465 = vsel %vm442, %v459, 0.0
      %v466 = vsel %vm443, %v458, 0.0
      %v467 = vsel %vm444, %v459, 0.0
      %v468 = vsel %vm445, %v458, 0.0
      %v469 = vsel %vm446, %v459, 0.0
      %v470 = vsel %vm447, %v458, 0.0
      %v471 = vsel %vm448, %v459, 0.0
      %v472 = vsel %vm449, %v458, 0.0
      %v473 = vsel %vm450, %v459, 0.0
      %v474 = vsel %vm451, %v458, 0.0
      %v475 = vsel %vm452, %v459, 0.0
      %v476 = vadd.f32 %v415, %v460
      %v477 = vadd.f32 %v416, %v461
      %v478 = vadd.f32 %v417, %v462
      %v479 = vadd.f32 %v418, %v463
      %v480 = vadd.f32 %v419, %v464
      %v481 = vadd.f32 %v420, %v465
      %v482 = vadd.f32 %v421, %v466
      %v483 = vadd.f32 %v422, %v467
      %v484 = vadd.f32 %v423, %v468
      %v485 = vadd.f32 %v424, %v469
      %v486 = vadd.f32 %v425, %v470
      %v487 = vadd.f32 %v426, %v471
      %v488 = vadd.f32 %v427, %v472
      %v489 = vadd.f32 %v428, %v473
      %v490 = vadd.f32 %v429, %v474
      %v491 = vadd.f32 %v430, %v475
      %v492 = vld [vmem:[%s219] sm:$0x7]
      %v493 = vmul.f32 %v230, 4.0
      %v494 = vfloor.f32 %v493
      %v495 = vsub.f32 %v493, %v494
      %v496 = vcvt.f32.s32.to.zero.pseudo %v494
      %v497 = vsub.f32 1.0, %v495
      %v499 = vrot.slane %v497, 7
      %v500 = vrot.slane %v499, 2
      %v502 = vmul.f32 %v497, %v500
      %v503 = vmul.f32 %v495, %v500
      %v505 = vrot.slane %v495, 7
      %v506 = vrot.slane %v505, 2
      %v508 = vmul.f32 %v497, %v506
      %v509 = vmul.f32 %v495, %v506
      %v510 = vmul.u32 %v496, 2654435761
      %v511 = vrot.slane %v510, 7
      %v512 = vrot.slane %v511, 2
      %v513 = vxor.u32 %v496, %v512
      %v514 = vand.u32 %v513, 63
      %v515 = vperm.slane %v514, 0
      %v516 = vperm.slane %v514, 2
      %v517 = vperm.slane %v515, 0
      %v518 = vperm.slane %v516, 0
      %vm519 = vcmp.eq.s32.totalorder %v232, %v517
      %vm520 = vcmp.eq.s32.totalorder %v232, %v518
      %vm521 = vcmp.eq.s32.totalorder %v233, %v517
      %vm522 = vcmp.eq.s32.totalorder %v233, %v518
      %vm523 = vcmp.eq.s32.totalorder %v234, %v517
      %vm524 = vcmp.eq.s32.totalorder %v234, %v518
      %vm525 = vcmp.eq.s32.totalorder %v235, %v517
      %vm526 = vcmp.eq.s32.totalorder %v235, %v518
      %vm527 = vcmp.eq.s32.totalorder %v236, %v517
      %vm528 = vcmp.eq.s32.totalorder %v236, %v518
      %vm529 = vcmp.eq.s32.totalorder %v237, %v517
      %vm530 = vcmp.eq.s32.totalorder %v237, %v518
      %vm531 = vcmp.eq.s32.totalorder %v238, %v517
      %vm532 = vcmp.eq.s32.totalorder %v238, %v518
      %vm533 = vcmp.eq.s32.totalorder %v239, %v517
      %vm534 = vcmp.eq.s32.totalorder %v239, %v518
      %v536 = vperm.slane %v502, 0
      %v537 = vperm.slane %v502, 2
      %v540 = vperm.slane %v536, 0
      %v541 = vperm.slane %v537, 0
      %v542 = vsel %vm519, %v540, 0.0
      %v543 = vsel %vm520, %v541, 0.0
      %v544 = vsel %vm521, %v540, 0.0
      %v545 = vsel %vm522, %v541, 0.0
      %v546 = vsel %vm523, %v540, 0.0
      %v547 = vsel %vm524, %v541, 0.0
      %v548 = vsel %vm525, %v540, 0.0
      %v549 = vsel %vm526, %v541, 0.0
      %v550 = vsel %vm527, %v540, 0.0
      %v551 = vsel %vm528, %v541, 0.0
      %v552 = vsel %vm529, %v540, 0.0
      %v553 = vsel %vm530, %v541, 0.0
      %v554 = vsel %vm531, %v540, 0.0
      %v555 = vsel %vm532, %v541, 0.0
      %v556 = vsel %vm533, %v540, 0.0
      %v557 = vsel %vm534, %v541, 0.0
      %v558 = vadd.s32 %v496, 1
      %v559 = vxor.u32 %v558, %v512
      %v560 = vand.u32 %v559, 63
      %v561 = vperm.slane %v560, 0
      %v562 = vperm.slane %v560, 2
      %v563 = vperm.slane %v561, 0
      %v564 = vperm.slane %v562, 0
      %vm565 = vcmp.eq.s32.totalorder %v232, %v563
      %vm566 = vcmp.eq.s32.totalorder %v232, %v564
      %vm567 = vcmp.eq.s32.totalorder %v233, %v563
      %vm568 = vcmp.eq.s32.totalorder %v233, %v564
      %vm569 = vcmp.eq.s32.totalorder %v234, %v563
      %vm570 = vcmp.eq.s32.totalorder %v234, %v564
      %vm571 = vcmp.eq.s32.totalorder %v235, %v563
      %vm572 = vcmp.eq.s32.totalorder %v235, %v564
      %vm573 = vcmp.eq.s32.totalorder %v236, %v563
      %vm574 = vcmp.eq.s32.totalorder %v236, %v564
      %vm575 = vcmp.eq.s32.totalorder %v237, %v563
      %vm576 = vcmp.eq.s32.totalorder %v237, %v564
      %vm577 = vcmp.eq.s32.totalorder %v238, %v563
      %vm578 = vcmp.eq.s32.totalorder %v238, %v564
      %vm579 = vcmp.eq.s32.totalorder %v239, %v563
      %vm580 = vcmp.eq.s32.totalorder %v239, %v564
      %v582 = vperm.slane %v503, 0
      %v583 = vperm.slane %v503, 2
      %v586 = vperm.slane %v582, 0
      %v587 = vperm.slane %v583, 0
      %v588 = vsel %vm565, %v586, 0.0
      %v589 = vsel %vm566, %v587, 0.0
      %v590 = vsel %vm567, %v586, 0.0
      %v591 = vsel %vm568, %v587, 0.0
      %v592 = vsel %vm569, %v586, 0.0
      %v593 = vsel %vm570, %v587, 0.0
      %v594 = vsel %vm571, %v586, 0.0
      %v595 = vsel %vm572, %v587, 0.0
      %v596 = vsel %vm573, %v586, 0.0
      %v597 = vsel %vm574, %v587, 0.0
      %v598 = vsel %vm575, %v586, 0.0
      %v599 = vsel %vm576, %v587, 0.0
      %v600 = vsel %vm577, %v586, 0.0
      %v601 = vsel %vm578, %v587, 0.0
      %v602 = vsel %vm579, %v586, 0.0
      %v603 = vsel %vm580, %v587, 0.0
      %v604 = vadd.f32 %v542, %v588
      %v605 = vadd.f32 %v543, %v589
      %v606 = vadd.f32 %v544, %v590
      %v607 = vadd.f32 %v545, %v591
      %v608 = vadd.f32 %v546, %v592
      %v609 = vadd.f32 %v547, %v593
      %v610 = vadd.f32 %v548, %v594
      %v611 = vadd.f32 %v549, %v595
      %v612 = vadd.f32 %v550, %v596
      %v613 = vadd.f32 %v551, %v597
      %v614 = vadd.f32 %v552, %v598
      %v615 = vadd.f32 %v553, %v599
      %v616 = vadd.f32 %v554, %v600
      %v617 = vadd.f32 %v555, %v601
      %v618 = vadd.f32 %v556, %v602
      %v619 = vadd.f32 %v557, %v603
      %v620 = vmul.u32 %v558, 2654435761
      %v621 = vrot.slane %v620, 7
      %v622 = vrot.slane %v621, 2
      %v623 = vxor.u32 %v496, %v622
      %v624 = vand.u32 %v623, 63
      %v625 = vperm.slane %v624, 0
      %v626 = vperm.slane %v624, 2
      %v627 = vperm.slane %v625, 0
      %v628 = vperm.slane %v626, 0
      %vm629 = vcmp.eq.s32.totalorder %v232, %v627
      %vm630 = vcmp.eq.s32.totalorder %v232, %v628
      %vm631 = vcmp.eq.s32.totalorder %v233, %v627
      %vm632 = vcmp.eq.s32.totalorder %v233, %v628
      %vm633 = vcmp.eq.s32.totalorder %v234, %v627
      %vm634 = vcmp.eq.s32.totalorder %v234, %v628
      %vm635 = vcmp.eq.s32.totalorder %v235, %v627
      %vm636 = vcmp.eq.s32.totalorder %v235, %v628
      %vm637 = vcmp.eq.s32.totalorder %v236, %v627
      %vm638 = vcmp.eq.s32.totalorder %v236, %v628
      %vm639 = vcmp.eq.s32.totalorder %v237, %v627
      %vm640 = vcmp.eq.s32.totalorder %v237, %v628
      %vm641 = vcmp.eq.s32.totalorder %v238, %v627
      %vm642 = vcmp.eq.s32.totalorder %v238, %v628
      %vm643 = vcmp.eq.s32.totalorder %v239, %v627
      %vm644 = vcmp.eq.s32.totalorder %v239, %v628
      %v646 = vperm.slane %v508, 0
      %v647 = vperm.slane %v508, 2
      %v650 = vperm.slane %v646, 0
      %v651 = vperm.slane %v647, 0
      %v652 = vsel %vm629, %v650, 0.0
      %v653 = vsel %vm630, %v651, 0.0
      %v654 = vsel %vm631, %v650, 0.0
      %v655 = vsel %vm632, %v651, 0.0
      %v656 = vsel %vm633, %v650, 0.0
      %v657 = vsel %vm634, %v651, 0.0
      %v658 = vsel %vm635, %v650, 0.0
      %v659 = vsel %vm636, %v651, 0.0
      %v660 = vsel %vm637, %v650, 0.0
      %v661 = vsel %vm638, %v651, 0.0
      %v662 = vsel %vm639, %v650, 0.0
      %v663 = vsel %vm640, %v651, 0.0
      %v664 = vsel %vm641, %v650, 0.0
      %v665 = vsel %vm642, %v651, 0.0
      %v666 = vsel %vm643, %v650, 0.0
      %v667 = vsel %vm644, %v651, 0.0
      %v668 = vadd.f32 %v604, %v652
      %v669 = vadd.f32 %v605, %v653
      %v670 = vadd.f32 %v606, %v654
      %v671 = vadd.f32 %v607, %v655
      %v672 = vadd.f32 %v608, %v656
      %v673 = vadd.f32 %v609, %v657
      %v674 = vadd.f32 %v610, %v658
      %v675 = vadd.f32 %v611, %v659
      %v676 = vadd.f32 %v612, %v660
      %v677 = vadd.f32 %v613, %v661
      %v678 = vadd.f32 %v614, %v662
      %v679 = vadd.f32 %v615, %v663
      %v680 = vadd.f32 %v616, %v664
      %v681 = vadd.f32 %v617, %v665
      %v682 = vadd.f32 %v618, %v666
      %v683 = vadd.f32 %v619, %v667
      %v684 = vxor.u32 %v558, %v622
      %v685 = vand.u32 %v684, 63
      %v686 = vperm.slane %v685, 0
      %v687 = vperm.slane %v685, 2
      %v688 = vperm.slane %v686, 0
      %v689 = vperm.slane %v687, 0
      %vm690 = vcmp.eq.s32.totalorder %v232, %v688
      %vm691 = vcmp.eq.s32.totalorder %v232, %v689
      %vm692 = vcmp.eq.s32.totalorder %v233, %v688
      %vm693 = vcmp.eq.s32.totalorder %v233, %v689
      %vm694 = vcmp.eq.s32.totalorder %v234, %v688
      %vm695 = vcmp.eq.s32.totalorder %v234, %v689
      %vm696 = vcmp.eq.s32.totalorder %v235, %v688
      %vm697 = vcmp.eq.s32.totalorder %v235, %v689
      %vm698 = vcmp.eq.s32.totalorder %v236, %v688
      %vm699 = vcmp.eq.s32.totalorder %v236, %v689
      %vm700 = vcmp.eq.s32.totalorder %v237, %v688
      %vm701 = vcmp.eq.s32.totalorder %v237, %v689
      %vm702 = vcmp.eq.s32.totalorder %v238, %v688
      %vm703 = vcmp.eq.s32.totalorder %v238, %v689
      %vm704 = vcmp.eq.s32.totalorder %v239, %v688
      %vm705 = vcmp.eq.s32.totalorder %v239, %v689
      %v707 = vperm.slane %v509, 0
      %v708 = vperm.slane %v509, 2
      %v711 = vperm.slane %v707, 0
      %v712 = vperm.slane %v708, 0
      %v713 = vsel %vm690, %v711, 0.0
      %v714 = vsel %vm691, %v712, 0.0
      %v715 = vsel %vm692, %v711, 0.0
      %v716 = vsel %vm693, %v712, 0.0
      %v717 = vsel %vm694, %v711, 0.0
      %v718 = vsel %vm695, %v712, 0.0
      %v719 = vsel %vm696, %v711, 0.0
      %v720 = vsel %vm697, %v712, 0.0
      %v721 = vsel %vm698, %v711, 0.0
      %v722 = vsel %vm699, %v712, 0.0
      %v723 = vsel %vm700, %v711, 0.0
      %v724 = vsel %vm701, %v712, 0.0
      %v725 = vsel %vm702, %v711, 0.0
      %v726 = vsel %vm703, %v712, 0.0
      %v727 = vsel %vm704, %v711, 0.0
      %v728 = vsel %vm705, %v712, 0.0
      %v729 = vadd.f32 %v668, %v713
      %v730 = vadd.f32 %v669, %v714
      %v731 = vadd.f32 %v670, %v715
      %v732 = vadd.f32 %v671, %v716
      %v733 = vadd.f32 %v672, %v717
      %v734 = vadd.f32 %v673, %v718
      %v735 = vadd.f32 %v674, %v719
      %v736 = vadd.f32 %v675, %v720
      %v737 = vadd.f32 %v676, %v721
      %v738 = vadd.f32 %v677, %v722
      %v739 = vadd.f32 %v678, %v723
      %v740 = vadd.f32 %v679, %v724
      %v741 = vadd.f32 %v680, %v725
      %v742 = vadd.f32 %v681, %v726
      %v743 = vadd.f32 %v682, %v727
      %v744 = vadd.f32 %v683, %v728
      %s745 = scalar_lea.vmem %s219, 4
      %v746 = vld [vmem:[%s745] sm:$0x7]
      %vm747 = vcmask 523264
      %v749 = vsel %vm747, %v746, 0
      %751 = vmatpush.msra.mxu0 0.0
      %752 = vmatpush.msra.mxu0 0.0
      %753 = vmatpush.msra.mxu0 0.0
      %754 = vmatpush.msra.mxu0 0.0
      %755 = vmatpush.msra.mxu0 0.0
      %756 = vmatpush.msra.mxu0 0.0
      %757 = vmatpush.msra.mxu0 0.0
      %758 = vmatpush.msra.mxu0 0.0
      %759 = vmatpush.msra.mxu0 %v743
      %760 = vmatpush.msra.mxu0 %v741
      %761 = vmatpush.msra.mxu0 %v739
      %762 = vmatpush.msra.mxu0 %v737
      %763 = vmatpush.msra.mxu0 %v735
      %764 = vmatpush.msra.mxu0 %v733
      %765 = vmatpush.msra.mxu0 %v731
      %766 = vmatpush.msra.mxu0 %v729
      %767 = vmatmul.f32.gmra.mxu0 %v749
      %v768 = vpop.f32.mrf.mxu0
      %v769 = vadd.f32 0.0, %v768
      %770 = vdwg.mxu0
      %771 = vmatpush.msra.mxu0 0.0
      %772 = vmatpush.msra.mxu0 0.0
      %773 = vmatpush.msra.mxu0 0.0
      %774 = vmatpush.msra.mxu0 0.0
      %775 = vmatpush.msra.mxu0 0.0
      %776 = vmatpush.msra.mxu0 0.0
      %777 = vmatpush.msra.mxu0 0.0
      %778 = vmatpush.msra.mxu0 0.0
      %779 = vmatpush.msra.mxu0 %v744
      %780 = vmatpush.msra.mxu0 %v742
      %781 = vmatpush.msra.mxu0 %v740
      %782 = vmatpush.msra.mxu0 %v738
      %783 = vmatpush.msra.mxu0 %v736
      %784 = vmatpush.msra.mxu0 %v734
      %785 = vmatpush.msra.mxu0 %v732
      %786 = vmatpush.msra.mxu0 %v730
      %787 = vmatmul.f32.gmra.mxu0 %v749
      %v788 = vpop.f32.mrf.mxu0
      %v789 = vadd.f32 0.0, %v788
      %790 = vdwg.mxu0
      %v792 = vsel %vm747, %v492, 0
      %794 = vmatpush.msra.mxu0 0.0
      %795 = vmatpush.msra.mxu0 0.0
      %796 = vmatpush.msra.mxu0 0.0
      %797 = vmatpush.msra.mxu0 0.0
      %798 = vmatpush.msra.mxu0 0.0
      %799 = vmatpush.msra.mxu0 0.0
      %800 = vmatpush.msra.mxu0 0.0
      %801 = vmatpush.msra.mxu0 0.0
      %802 = vmatpush.msra.mxu0 %v490
      %803 = vmatpush.msra.mxu0 %v488
      %804 = vmatpush.msra.mxu0 %v486
      %805 = vmatpush.msra.mxu0 %v484
      %806 = vmatpush.msra.mxu0 %v482
      %807 = vmatpush.msra.mxu0 %v480
      %808 = vmatpush.msra.mxu0 %v478
      %809 = vmatpush.msra.mxu0 %v476
      %810 = vmatmul.f32.gmra.mxu0 %v792
      %v811 = vpop.f32.mrf.mxu0
      %v812 = vadd.f32 %v769, %v811
      %813 = vdwg.mxu0
      %814 = vmatpush.msra.mxu0 0.0
      %815 = vmatpush.msra.mxu0 0.0
      %816 = vmatpush.msra.mxu0 0.0
      %817 = vmatpush.msra.mxu0 0.0
      %818 = vmatpush.msra.mxu0 0.0
      %819 = vmatpush.msra.mxu0 0.0
      %820 = vmatpush.msra.mxu0 0.0
      %821 = vmatpush.msra.mxu0 0.0
      %822 = vmatpush.msra.mxu0 %v491
      %823 = vmatpush.msra.mxu0 %v489
      %824 = vmatpush.msra.mxu0 %v487
      %825 = vmatpush.msra.mxu0 %v485
      %826 = vmatpush.msra.mxu0 %v483
      %827 = vmatpush.msra.mxu0 %v481
      %828 = vmatpush.msra.mxu0 %v479
      %829 = vmatpush.msra.mxu0 %v477
      %830 = vmatmul.f32.gmra.mxu0 %v792
      %v831 = vpop.f32.mrf.mxu0
      %v832 = vadd.f32 %v789, %v831
      %833 = vdwg.mxu0
      %v834 = vmul.f32 %v230, 8.0
      %v835 = vfloor.f32 %v834
      %v836 = vsub.f32 %v834, %v835
      %v837 = vcvt.f32.s32.to.zero.pseudo %v835
      %v838 = vsub.f32 1.0, %v836
      %v840 = vrot.slane %v838, 7
      %v841 = vrot.slane %v840, 2
      %v843 = vmul.f32 %v838, %v841
      %v844 = vmul.f32 %v836, %v841
      %v846 = vrot.slane %v836, 7
      %v847 = vrot.slane %v846, 2
      %v849 = vmul.f32 %v838, %v847
      %v850 = vmul.f32 %v836, %v847
      %v851 = vmul.u32 %v837, 2654435761
      %v852 = vrot.slane %v851, 7
      %v853 = vrot.slane %v852, 2
      %v854 = vxor.u32 %v837, %v853
      %v855 = vand.u32 %v854, 63
      %v856 = vperm.slane %v855, 0
      %v857 = vperm.slane %v855, 2
      %v858 = vperm.slane %v856, 0
      %v859 = vperm.slane %v857, 0
      %vm860 = vcmp.eq.s32.totalorder %v232, %v858
      %vm861 = vcmp.eq.s32.totalorder %v232, %v859
      %vm862 = vcmp.eq.s32.totalorder %v233, %v858
      %vm863 = vcmp.eq.s32.totalorder %v233, %v859
      %vm864 = vcmp.eq.s32.totalorder %v234, %v858
      %vm865 = vcmp.eq.s32.totalorder %v234, %v859
      %vm866 = vcmp.eq.s32.totalorder %v235, %v858
      %vm867 = vcmp.eq.s32.totalorder %v235, %v859
      %vm868 = vcmp.eq.s32.totalorder %v236, %v858
      %vm869 = vcmp.eq.s32.totalorder %v236, %v859
      %vm870 = vcmp.eq.s32.totalorder %v237, %v858
      %vm871 = vcmp.eq.s32.totalorder %v237, %v859
      %vm872 = vcmp.eq.s32.totalorder %v238, %v858
      %vm873 = vcmp.eq.s32.totalorder %v238, %v859
      %vm874 = vcmp.eq.s32.totalorder %v239, %v858
      %vm875 = vcmp.eq.s32.totalorder %v239, %v859
      %v877 = vperm.slane %v843, 0
      %v878 = vperm.slane %v843, 2
      %v881 = vperm.slane %v877, 0
      %v882 = vperm.slane %v878, 0
      %v883 = vsel %vm860, %v881, 0.0
      %v884 = vsel %vm861, %v882, 0.0
      %v885 = vsel %vm862, %v881, 0.0
      %v886 = vsel %vm863, %v882, 0.0
      %v887 = vsel %vm864, %v881, 0.0
      %v888 = vsel %vm865, %v882, 0.0
      %v889 = vsel %vm866, %v881, 0.0
      %v890 = vsel %vm867, %v882, 0.0
      %v891 = vsel %vm868, %v881, 0.0
      %v892 = vsel %vm869, %v882, 0.0
      %v893 = vsel %vm870, %v881, 0.0
      %v894 = vsel %vm871, %v882, 0.0
      %v895 = vsel %vm872, %v881, 0.0
      %v896 = vsel %vm873, %v882, 0.0
      %v897 = vsel %vm874, %v881, 0.0
      %v898 = vsel %vm875, %v882, 0.0
      %v899 = vadd.s32 %v837, 1
      %v900 = vxor.u32 %v899, %v853
      %v901 = vand.u32 %v900, 63
      %v902 = vperm.slane %v901, 0
      %v903 = vperm.slane %v901, 2
      %v904 = vperm.slane %v902, 0
      %v905 = vperm.slane %v903, 0
      %vm906 = vcmp.eq.s32.totalorder %v232, %v904
      %vm907 = vcmp.eq.s32.totalorder %v232, %v905
      %vm908 = vcmp.eq.s32.totalorder %v233, %v904
      %vm909 = vcmp.eq.s32.totalorder %v233, %v905
      %vm910 = vcmp.eq.s32.totalorder %v234, %v904
      %vm911 = vcmp.eq.s32.totalorder %v234, %v905
      %vm912 = vcmp.eq.s32.totalorder %v235, %v904
      %vm913 = vcmp.eq.s32.totalorder %v235, %v905
      %vm914 = vcmp.eq.s32.totalorder %v236, %v904
      %vm915 = vcmp.eq.s32.totalorder %v236, %v905
      %vm916 = vcmp.eq.s32.totalorder %v237, %v904
      %vm917 = vcmp.eq.s32.totalorder %v237, %v905
      %vm918 = vcmp.eq.s32.totalorder %v238, %v904
      %vm919 = vcmp.eq.s32.totalorder %v238, %v905
      %vm920 = vcmp.eq.s32.totalorder %v239, %v904
      %vm921 = vcmp.eq.s32.totalorder %v239, %v905
      %v923 = vperm.slane %v844, 0
      %v924 = vperm.slane %v844, 2
      %v927 = vperm.slane %v923, 0
      %v928 = vperm.slane %v924, 0
      %v929 = vsel %vm906, %v927, 0.0
      %v930 = vsel %vm907, %v928, 0.0
      %v931 = vsel %vm908, %v927, 0.0
      %v932 = vsel %vm909, %v928, 0.0
      %v933 = vsel %vm910, %v927, 0.0
      %v934 = vsel %vm911, %v928, 0.0
      %v935 = vsel %vm912, %v927, 0.0
      %v936 = vsel %vm913, %v928, 0.0
      %v937 = vsel %vm914, %v927, 0.0
      %v938 = vsel %vm915, %v928, 0.0
      %v939 = vsel %vm916, %v927, 0.0
      %v940 = vsel %vm917, %v928, 0.0
      %v941 = vsel %vm918, %v927, 0.0
      %v942 = vsel %vm919, %v928, 0.0
      %v943 = vsel %vm920, %v927, 0.0
      %v944 = vsel %vm921, %v928, 0.0
      %v945 = vadd.f32 %v883, %v929
      %v946 = vadd.f32 %v884, %v930
      %v947 = vadd.f32 %v885, %v931
      %v948 = vadd.f32 %v886, %v932
      %v949 = vadd.f32 %v887, %v933
      %v950 = vadd.f32 %v888, %v934
      %v951 = vadd.f32 %v889, %v935
      %v952 = vadd.f32 %v890, %v936
      %v953 = vadd.f32 %v891, %v937
      %v954 = vadd.f32 %v892, %v938
      %v955 = vadd.f32 %v893, %v939
      %v956 = vadd.f32 %v894, %v940
      %v957 = vadd.f32 %v895, %v941
      %v958 = vadd.f32 %v896, %v942
      %v959 = vadd.f32 %v897, %v943
      %v960 = vadd.f32 %v898, %v944
      %v961 = vmul.u32 %v899, 2654435761
      %v962 = vrot.slane %v961, 7
      %v963 = vrot.slane %v962, 2
      %v964 = vxor.u32 %v837, %v963
      %v965 = vand.u32 %v964, 63
      %v966 = vperm.slane %v965, 0
      %v967 = vperm.slane %v965, 2
      %v968 = vperm.slane %v966, 0
      %v969 = vperm.slane %v967, 0
      %vm970 = vcmp.eq.s32.totalorder %v232, %v968
      %vm971 = vcmp.eq.s32.totalorder %v232, %v969
      %vm972 = vcmp.eq.s32.totalorder %v233, %v968
      %vm973 = vcmp.eq.s32.totalorder %v233, %v969
      %vm974 = vcmp.eq.s32.totalorder %v234, %v968
      %vm975 = vcmp.eq.s32.totalorder %v234, %v969
      %vm976 = vcmp.eq.s32.totalorder %v235, %v968
      %vm977 = vcmp.eq.s32.totalorder %v235, %v969
      %vm978 = vcmp.eq.s32.totalorder %v236, %v968
      %vm979 = vcmp.eq.s32.totalorder %v236, %v969
      %vm980 = vcmp.eq.s32.totalorder %v237, %v968
      %vm981 = vcmp.eq.s32.totalorder %v237, %v969
      %vm982 = vcmp.eq.s32.totalorder %v238, %v968
      %vm983 = vcmp.eq.s32.totalorder %v238, %v969
      %vm984 = vcmp.eq.s32.totalorder %v239, %v968
      %vm985 = vcmp.eq.s32.totalorder %v239, %v969
      %v987 = vperm.slane %v849, 0
      %v988 = vperm.slane %v849, 2
      %v991 = vperm.slane %v987, 0
      %v992 = vperm.slane %v988, 0
      %v993 = vsel %vm970, %v991, 0.0
      %v994 = vsel %vm971, %v992, 0.0
      %v995 = vsel %vm972, %v991, 0.0
      %v996 = vsel %vm973, %v992, 0.0
      %v997 = vsel %vm974, %v991, 0.0
      %v998 = vsel %vm975, %v992, 0.0
      %v999 = vsel %vm976, %v991, 0.0
      %v1000 = vsel %vm977, %v992, 0.0
      %v1001 = vsel %vm978, %v991, 0.0
      %v1002 = vsel %vm979, %v992, 0.0
      %v1003 = vsel %vm980, %v991, 0.0
      %v1004 = vsel %vm981, %v992, 0.0
      %v1005 = vsel %vm982, %v991, 0.0
      %v1006 = vsel %vm983, %v992, 0.0
      %v1007 = vsel %vm984, %v991, 0.0
      %v1008 = vsel %vm985, %v992, 0.0
      %v1009 = vadd.f32 %v945, %v993
      %v1010 = vadd.f32 %v946, %v994
      %v1011 = vadd.f32 %v947, %v995
      %v1012 = vadd.f32 %v948, %v996
      %v1013 = vadd.f32 %v949, %v997
      %v1014 = vadd.f32 %v950, %v998
      %v1015 = vadd.f32 %v951, %v999
      %v1016 = vadd.f32 %v952, %v1000
      %v1017 = vadd.f32 %v953, %v1001
      %v1018 = vadd.f32 %v954, %v1002
      %v1019 = vadd.f32 %v955, %v1003
      %v1020 = vadd.f32 %v956, %v1004
      %v1021 = vadd.f32 %v957, %v1005
      %v1022 = vadd.f32 %v958, %v1006
      %v1023 = vadd.f32 %v959, %v1007
      %v1024 = vadd.f32 %v960, %v1008
      %v1025 = vxor.u32 %v899, %v963
      %v1026 = vand.u32 %v1025, 63
      %v1027 = vperm.slane %v1026, 0
      %v1028 = vperm.slane %v1026, 2
      %v1029 = vperm.slane %v1027, 0
      %v1030 = vperm.slane %v1028, 0
      %vm1031 = vcmp.eq.s32.totalorder %v232, %v1029
      %vm1032 = vcmp.eq.s32.totalorder %v232, %v1030
      %vm1033 = vcmp.eq.s32.totalorder %v233, %v1029
      %vm1034 = vcmp.eq.s32.totalorder %v233, %v1030
      %vm1035 = vcmp.eq.s32.totalorder %v234, %v1029
      %vm1036 = vcmp.eq.s32.totalorder %v234, %v1030
      %vm1037 = vcmp.eq.s32.totalorder %v235, %v1029
      %vm1038 = vcmp.eq.s32.totalorder %v235, %v1030
      %vm1039 = vcmp.eq.s32.totalorder %v236, %v1029
      %vm1040 = vcmp.eq.s32.totalorder %v236, %v1030
      %vm1041 = vcmp.eq.s32.totalorder %v237, %v1029
      %vm1042 = vcmp.eq.s32.totalorder %v237, %v1030
      %vm1043 = vcmp.eq.s32.totalorder %v238, %v1029
      %vm1044 = vcmp.eq.s32.totalorder %v238, %v1030
      %vm1045 = vcmp.eq.s32.totalorder %v239, %v1029
      %vm1046 = vcmp.eq.s32.totalorder %v239, %v1030
      %v1048 = vperm.slane %v850, 0
      %v1049 = vperm.slane %v850, 2
      %v1052 = vperm.slane %v1048, 0
      %v1053 = vperm.slane %v1049, 0
      %v1054 = vsel %vm1031, %v1052, 0.0
      %v1055 = vsel %vm1032, %v1053, 0.0
      %v1056 = vsel %vm1033, %v1052, 0.0
      %v1057 = vsel %vm1034, %v1053, 0.0
      %v1058 = vsel %vm1035, %v1052, 0.0
      %v1059 = vsel %vm1036, %v1053, 0.0
      %v1060 = vsel %vm1037, %v1052, 0.0
      %v1061 = vsel %vm1038, %v1053, 0.0
      %v1062 = vsel %vm1039, %v1052, 0.0
      %v1063 = vsel %vm1040, %v1053, 0.0
      %v1064 = vsel %vm1041, %v1052, 0.0
      %v1065 = vsel %vm1042, %v1053, 0.0
      %v1066 = vsel %vm1043, %v1052, 0.0
      %v1067 = vsel %vm1044, %v1053, 0.0
      %v1068 = vsel %vm1045, %v1052, 0.0
      %v1069 = vsel %vm1046, %v1053, 0.0
      %v1070 = vadd.f32 %v1009, %v1054
      %v1071 = vadd.f32 %v1010, %v1055
      %v1072 = vadd.f32 %v1011, %v1056
      %v1073 = vadd.f32 %v1012, %v1057
      %v1074 = vadd.f32 %v1013, %v1058
      %v1075 = vadd.f32 %v1014, %v1059
      %v1076 = vadd.f32 %v1015, %v1060
      %v1077 = vadd.f32 %v1016, %v1061
      %v1078 = vadd.f32 %v1017, %v1062
      %v1079 = vadd.f32 %v1018, %v1063
      %v1080 = vadd.f32 %v1019, %v1064
      %v1081 = vadd.f32 %v1020, %v1065
      %v1082 = vadd.f32 %v1021, %v1066
      %v1083 = vadd.f32 %v1022, %v1067
      %v1084 = vadd.f32 %v1023, %v1068
      %v1085 = vadd.f32 %v1024, %v1069
      %s1086 = scalar_lea.vmem %s219, 8
      %v1087 = vld [vmem:[%s1086] sm:$0x7]
      %v1089 = vsel %vm747, %v1087, 0
      %1091 = vmatpush.msra.mxu0 0.0
      %1092 = vmatpush.msra.mxu0 0.0
      %1093 = vmatpush.msra.mxu0 0.0
      %1094 = vmatpush.msra.mxu0 0.0
      %1095 = vmatpush.msra.mxu0 0.0
      %1096 = vmatpush.msra.mxu0 0.0
      %1097 = vmatpush.msra.mxu0 0.0
      %1098 = vmatpush.msra.mxu0 0.0
      %1099 = vmatpush.msra.mxu0 %v1084
      %1100 = vmatpush.msra.mxu0 %v1082
      %1101 = vmatpush.msra.mxu0 %v1080
      %1102 = vmatpush.msra.mxu0 %v1078
      %1103 = vmatpush.msra.mxu0 %v1076
      %1104 = vmatpush.msra.mxu0 %v1074
      %1105 = vmatpush.msra.mxu0 %v1072
      %1106 = vmatpush.msra.mxu0 %v1070
      %1107 = vmatmul.f32.gmra.mxu0 %v1089
      %v1108 = vpop.f32.mrf.mxu0
      %v1109 = vadd.f32 0.0, %v1108
      %1110 = vdwg.mxu0
      %1111 = vmatpush.msra.mxu0 0.0
      %1112 = vmatpush.msra.mxu0 0.0
      %1113 = vmatpush.msra.mxu0 0.0
      %1114 = vmatpush.msra.mxu0 0.0
      %1115 = vmatpush.msra.mxu0 0.0
      %1116 = vmatpush.msra.mxu0 0.0
      %1117 = vmatpush.msra.mxu0 0.0
      %1118 = vmatpush.msra.mxu0 0.0
      %1119 = vmatpush.msra.mxu0 %v1085
      %1120 = vmatpush.msra.mxu0 %v1083
      %1121 = vmatpush.msra.mxu0 %v1081
      %1122 = vmatpush.msra.mxu0 %v1079
      %1123 = vmatpush.msra.mxu0 %v1077
      %1124 = vmatpush.msra.mxu0 %v1075
      %1125 = vmatpush.msra.mxu0 %v1073
      %1126 = vmatpush.msra.mxu0 %v1071
      %1127 = vmatmul.f32.gmra.mxu0 %v1089
      %v1128 = vpop.f32.mrf.mxu0
      %v1129 = vadd.f32 0.0, %v1128
      %1130 = vdwg.mxu0
      %v1131 = vadd.f32 %v812, %v1109
      %v1132 = vadd.f32 %v832, %v1129
      %v1133 = vmul.f32 %v230, 16.0
      %v1134 = vfloor.f32 %v1133
      %v1135 = vsub.f32 %v1133, %v1134
      %v1136 = vcvt.f32.s32.to.zero.pseudo %v1134
      %v1137 = vsub.f32 1.0, %v1135
      %v1139 = vrot.slane %v1137, 7
      %v1140 = vrot.slane %v1139, 2
      %v1142 = vmul.f32 %v1137, %v1140
      %v1143 = vmul.f32 %v1135, %v1140
      %v1145 = vrot.slane %v1135, 7
      %v1146 = vrot.slane %v1145, 2
      %v1148 = vmul.f32 %v1137, %v1146
      %v1149 = vmul.f32 %v1135, %v1146
      %v1150 = vmul.u32 %v1136, 2654435761
      %v1151 = vrot.slane %v1150, 7
      %v1152 = vrot.slane %v1151, 2
      %v1153 = vxor.u32 %v1136, %v1152
      %v1154 = vand.u32 %v1153, 63
      %v1155 = vperm.slane %v1154, 0
      %v1156 = vperm.slane %v1154, 2
      %v1157 = vperm.slane %v1155, 0
      %v1158 = vperm.slane %v1156, 0
      %vm1159 = vcmp.eq.s32.totalorder %v232, %v1157
      %vm1160 = vcmp.eq.s32.totalorder %v232, %v1158
      %vm1161 = vcmp.eq.s32.totalorder %v233, %v1157
      %vm1162 = vcmp.eq.s32.totalorder %v233, %v1158
      %vm1163 = vcmp.eq.s32.totalorder %v234, %v1157
      %vm1164 = vcmp.eq.s32.totalorder %v234, %v1158
      %vm1165 = vcmp.eq.s32.totalorder %v235, %v1157
      %vm1166 = vcmp.eq.s32.totalorder %v235, %v1158
      %vm1167 = vcmp.eq.s32.totalorder %v236, %v1157
      %vm1168 = vcmp.eq.s32.totalorder %v236, %v1158
      %vm1169 = vcmp.eq.s32.totalorder %v237, %v1157
      %vm1170 = vcmp.eq.s32.totalorder %v237, %v1158
      %vm1171 = vcmp.eq.s32.totalorder %v238, %v1157
      %vm1172 = vcmp.eq.s32.totalorder %v238, %v1158
      %vm1173 = vcmp.eq.s32.totalorder %v239, %v1157
      %vm1174 = vcmp.eq.s32.totalorder %v239, %v1158
      %v1176 = vperm.slane %v1142, 0
      %v1177 = vperm.slane %v1142, 2
      %v1180 = vperm.slane %v1176, 0
      %v1181 = vperm.slane %v1177, 0
      %v1182 = vsel %vm1159, %v1180, 0.0
      %v1183 = vsel %vm1160, %v1181, 0.0
      %v1184 = vsel %vm1161, %v1180, 0.0
      %v1185 = vsel %vm1162, %v1181, 0.0
      %v1186 = vsel %vm1163, %v1180, 0.0
      %v1187 = vsel %vm1164, %v1181, 0.0
      %v1188 = vsel %vm1165, %v1180, 0.0
      %v1189 = vsel %vm1166, %v1181, 0.0
      %v1190 = vsel %vm1167, %v1180, 0.0
      %v1191 = vsel %vm1168, %v1181, 0.0
      %v1192 = vsel %vm1169, %v1180, 0.0
      %v1193 = vsel %vm1170, %v1181, 0.0
      %v1194 = vsel %vm1171, %v1180, 0.0
      %v1195 = vsel %vm1172, %v1181, 0.0
      %v1196 = vsel %vm1173, %v1180, 0.0
      %v1197 = vsel %vm1174, %v1181, 0.0
      %v1198 = vadd.s32 %v1136, 1
      %v1199 = vxor.u32 %v1198, %v1152
      %v1200 = vand.u32 %v1199, 63
      %v1201 = vperm.slane %v1200, 0
      %v1202 = vperm.slane %v1200, 2
      %v1203 = vperm.slane %v1201, 0
      %v1204 = vperm.slane %v1202, 0
      %vm1205 = vcmp.eq.s32.totalorder %v232, %v1203
      %vm1206 = vcmp.eq.s32.totalorder %v232, %v1204
      %vm1207 = vcmp.eq.s32.totalorder %v233, %v1203
      %vm1208 = vcmp.eq.s32.totalorder %v233, %v1204
      %vm1209 = vcmp.eq.s32.totalorder %v234, %v1203
      %vm1210 = vcmp.eq.s32.totalorder %v234, %v1204
      %vm1211 = vcmp.eq.s32.totalorder %v235, %v1203
      %vm1212 = vcmp.eq.s32.totalorder %v235, %v1204
      %vm1213 = vcmp.eq.s32.totalorder %v236, %v1203
      %vm1214 = vcmp.eq.s32.totalorder %v236, %v1204
      %vm1215 = vcmp.eq.s32.totalorder %v237, %v1203
      %vm1216 = vcmp.eq.s32.totalorder %v237, %v1204
      %vm1217 = vcmp.eq.s32.totalorder %v238, %v1203
      %vm1218 = vcmp.eq.s32.totalorder %v238, %v1204
      %vm1219 = vcmp.eq.s32.totalorder %v239, %v1203
      %vm1220 = vcmp.eq.s32.totalorder %v239, %v1204
      %v1222 = vperm.slane %v1143, 0
      %v1223 = vperm.slane %v1143, 2
      %v1226 = vperm.slane %v1222, 0
      %v1227 = vperm.slane %v1223, 0
      %v1228 = vsel %vm1205, %v1226, 0.0
      %v1229 = vsel %vm1206, %v1227, 0.0
      %v1230 = vsel %vm1207, %v1226, 0.0
      %v1231 = vsel %vm1208, %v1227, 0.0
      %v1232 = vsel %vm1209, %v1226, 0.0
      %v1233 = vsel %vm1210, %v1227, 0.0
      %v1234 = vsel %vm1211, %v1226, 0.0
      %v1235 = vsel %vm1212, %v1227, 0.0
      %v1236 = vsel %vm1213, %v1226, 0.0
      %v1237 = vsel %vm1214, %v1227, 0.0
      %v1238 = vsel %vm1215, %v1226, 0.0
      %v1239 = vsel %vm1216, %v1227, 0.0
      %v1240 = vsel %vm1217, %v1226, 0.0
      %v1241 = vsel %vm1218, %v1227, 0.0
      %v1242 = vsel %vm1219, %v1226, 0.0
      %v1243 = vsel %vm1220, %v1227, 0.0
      %v1244 = vadd.f32 %v1182, %v1228
      %v1245 = vadd.f32 %v1183, %v1229
      %v1246 = vadd.f32 %v1184, %v1230
      %v1247 = vadd.f32 %v1185, %v1231
      %v1248 = vadd.f32 %v1186, %v1232
      %v1249 = vadd.f32 %v1187, %v1233
      %v1250 = vadd.f32 %v1188, %v1234
      %v1251 = vadd.f32 %v1189, %v1235
      %v1252 = vadd.f32 %v1190, %v1236
      %v1253 = vadd.f32 %v1191, %v1237
      %v1254 = vadd.f32 %v1192, %v1238
      %v1255 = vadd.f32 %v1193, %v1239
      %v1256 = vadd.f32 %v1194, %v1240
      %v1257 = vadd.f32 %v1195, %v1241
      %v1258 = vadd.f32 %v1196, %v1242
      %v1259 = vadd.f32 %v1197, %v1243
      %v1260 = vmul.u32 %v1198, 2654435761
      %v1261 = vrot.slane %v1260, 7
      %v1262 = vrot.slane %v1261, 2
      %v1263 = vxor.u32 %v1136, %v1262
      %v1264 = vand.u32 %v1263, 63
      %v1265 = vperm.slane %v1264, 0
      %v1266 = vperm.slane %v1264, 2
      %v1267 = vperm.slane %v1265, 0
      %v1268 = vperm.slane %v1266, 0
      %vm1269 = vcmp.eq.s32.totalorder %v232, %v1267
      %vm1270 = vcmp.eq.s32.totalorder %v232, %v1268
      %vm1271 = vcmp.eq.s32.totalorder %v233, %v1267
      %vm1272 = vcmp.eq.s32.totalorder %v233, %v1268
      %vm1273 = vcmp.eq.s32.totalorder %v234, %v1267
      %vm1274 = vcmp.eq.s32.totalorder %v234, %v1268
      %vm1275 = vcmp.eq.s32.totalorder %v235, %v1267
      %vm1276 = vcmp.eq.s32.totalorder %v235, %v1268
      %vm1277 = vcmp.eq.s32.totalorder %v236, %v1267
      %vm1278 = vcmp.eq.s32.totalorder %v236, %v1268
      %vm1279 = vcmp.eq.s32.totalorder %v237, %v1267
      %vm1280 = vcmp.eq.s32.totalorder %v237, %v1268
      %vm1281 = vcmp.eq.s32.totalorder %v238, %v1267
      %vm1282 = vcmp.eq.s32.totalorder %v238, %v1268
      %vm1283 = vcmp.eq.s32.totalorder %v239, %v1267
      %vm1284 = vcmp.eq.s32.totalorder %v239, %v1268
      %v1286 = vperm.slane %v1148, 0
      %v1287 = vperm.slane %v1148, 2
      %v1290 = vperm.slane %v1286, 0
      %v1291 = vperm.slane %v1287, 0
      %v1292 = vsel %vm1269, %v1290, 0.0
      %v1293 = vsel %vm1270, %v1291, 0.0
      %v1294 = vsel %vm1271, %v1290, 0.0
      %v1295 = vsel %vm1272, %v1291, 0.0
      %v1296 = vsel %vm1273, %v1290, 0.0
      %v1297 = vsel %vm1274, %v1291, 0.0
      %v1298 = vsel %vm1275, %v1290, 0.0
      %v1299 = vsel %vm1276, %v1291, 0.0
      %v1300 = vsel %vm1277, %v1290, 0.0
      %v1301 = vsel %vm1278, %v1291, 0.0
      %v1302 = vsel %vm1279, %v1290, 0.0
      %v1303 = vsel %vm1280, %v1291, 0.0
      %v1304 = vsel %vm1281, %v1290, 0.0
      %v1305 = vsel %vm1282, %v1291, 0.0
      %v1306 = vsel %vm1283, %v1290, 0.0
      %v1307 = vsel %vm1284, %v1291, 0.0
      %v1308 = vadd.f32 %v1244, %v1292
      %v1309 = vadd.f32 %v1245, %v1293
      %v1310 = vadd.f32 %v1246, %v1294
      %v1311 = vadd.f32 %v1247, %v1295
      %v1312 = vadd.f32 %v1248, %v1296
      %v1313 = vadd.f32 %v1249, %v1297
      %v1314 = vadd.f32 %v1250, %v1298
      %v1315 = vadd.f32 %v1251, %v1299
      %v1316 = vadd.f32 %v1252, %v1300
      %v1317 = vadd.f32 %v1253, %v1301
      %v1318 = vadd.f32 %v1254, %v1302
      %v1319 = vadd.f32 %v1255, %v1303
      %v1320 = vadd.f32 %v1256, %v1304
      %v1321 = vadd.f32 %v1257, %v1305
      %v1322 = vadd.f32 %v1258, %v1306
      %v1323 = vadd.f32 %v1259, %v1307
      %v1324 = vxor.u32 %v1198, %v1262
      %v1325 = vand.u32 %v1324, 63
      %v1326 = vperm.slane %v1325, 0
      %v1327 = vperm.slane %v1325, 2
      %v1328 = vperm.slane %v1326, 0
      %v1329 = vperm.slane %v1327, 0
      %vm1330 = vcmp.eq.s32.totalorder %v232, %v1328
      %vm1331 = vcmp.eq.s32.totalorder %v232, %v1329
      %vm1332 = vcmp.eq.s32.totalorder %v233, %v1328
      %vm1333 = vcmp.eq.s32.totalorder %v233, %v1329
      %vm1334 = vcmp.eq.s32.totalorder %v234, %v1328
      %vm1335 = vcmp.eq.s32.totalorder %v234, %v1329
      %vm1336 = vcmp.eq.s32.totalorder %v235, %v1328
      %vm1337 = vcmp.eq.s32.totalorder %v235, %v1329
      %vm1338 = vcmp.eq.s32.totalorder %v236, %v1328
      %vm1339 = vcmp.eq.s32.totalorder %v236, %v1329
      %vm1340 = vcmp.eq.s32.totalorder %v237, %v1328
      %vm1341 = vcmp.eq.s32.totalorder %v237, %v1329
      %vm1342 = vcmp.eq.s32.totalorder %v238, %v1328
      %vm1343 = vcmp.eq.s32.totalorder %v238, %v1329
      %vm1344 = vcmp.eq.s32.totalorder %v239, %v1328
      %vm1345 = vcmp.eq.s32.totalorder %v239, %v1329
      %v1347 = vperm.slane %v1149, 0
      %v1348 = vperm.slane %v1149, 2
      %v1351 = vperm.slane %v1347, 0
      %v1352 = vperm.slane %v1348, 0
      %v1353 = vsel %vm1330, %v1351, 0.0
      %v1354 = vsel %vm1331, %v1352, 0.0
      %v1355 = vsel %vm1332, %v1351, 0.0
      %v1356 = vsel %vm1333, %v1352, 0.0
      %v1357 = vsel %vm1334, %v1351, 0.0
      %v1358 = vsel %vm1335, %v1352, 0.0
      %v1359 = vsel %vm1336, %v1351, 0.0
      %v1360 = vsel %vm1337, %v1352, 0.0
      %v1361 = vsel %vm1338, %v1351, 0.0
      %v1362 = vsel %vm1339, %v1352, 0.0
      %v1363 = vsel %vm1340, %v1351, 0.0
      %v1364 = vsel %vm1341, %v1352, 0.0
      %v1365 = vsel %vm1342, %v1351, 0.0
      %v1366 = vsel %vm1343, %v1352, 0.0
      %v1367 = vsel %vm1344, %v1351, 0.0
      %v1368 = vsel %vm1345, %v1352, 0.0
      %v1369 = vadd.f32 %v1308, %v1353
      %v1370 = vadd.f32 %v1309, %v1354
      %v1371 = vadd.f32 %v1310, %v1355
      %v1372 = vadd.f32 %v1311, %v1356
      %v1373 = vadd.f32 %v1312, %v1357
      %v1374 = vadd.f32 %v1313, %v1358
      %v1375 = vadd.f32 %v1314, %v1359
      %v1376 = vadd.f32 %v1315, %v1360
      %v1377 = vadd.f32 %v1316, %v1361
      %v1378 = vadd.f32 %v1317, %v1362
      %v1379 = vadd.f32 %v1318, %v1363
      %v1380 = vadd.f32 %v1319, %v1364
      %v1381 = vadd.f32 %v1320, %v1365
      %v1382 = vadd.f32 %v1321, %v1366
      %v1383 = vadd.f32 %v1322, %v1367
      %v1384 = vadd.f32 %v1323, %v1368
      %s1385 = scalar_lea.vmem %s219, 12
      %v1386 = vld [vmem:[%s1385] sm:$0x7]
      %v1388 = vsel %vm747, %v1386, 0
      %1390 = vmatpush.msra.mxu0 0.0
      %1391 = vmatpush.msra.mxu0 0.0
      %1392 = vmatpush.msra.mxu0 0.0
      %1393 = vmatpush.msra.mxu0 0.0
      %1394 = vmatpush.msra.mxu0 0.0
      %1395 = vmatpush.msra.mxu0 0.0
      %1396 = vmatpush.msra.mxu0 0.0
      %1397 = vmatpush.msra.mxu0 0.0
      %1398 = vmatpush.msra.mxu0 %v1383
      %1399 = vmatpush.msra.mxu0 %v1381
      %1400 = vmatpush.msra.mxu0 %v1379
      %1401 = vmatpush.msra.mxu0 %v1377
      %1402 = vmatpush.msra.mxu0 %v1375
      %1403 = vmatpush.msra.mxu0 %v1373
      %1404 = vmatpush.msra.mxu0 %v1371
      %1405 = vmatpush.msra.mxu0 %v1369
      %1406 = vmatmul.f32.gmra.mxu0 %v1388
      %v1407 = vpop.f32.mrf.mxu0
      %v1408 = vadd.f32 0.0, %v1407
      %1409 = vdwg.mxu0
      %1410 = vmatpush.msra.mxu0 0.0
      %1411 = vmatpush.msra.mxu0 0.0
      %1412 = vmatpush.msra.mxu0 0.0
      %1413 = vmatpush.msra.mxu0 0.0
      %1414 = vmatpush.msra.mxu0 0.0
      %1415 = vmatpush.msra.mxu0 0.0
      %1416 = vmatpush.msra.mxu0 0.0
      %1417 = vmatpush.msra.mxu0 0.0
      %1418 = vmatpush.msra.mxu0 %v1384
      %1419 = vmatpush.msra.mxu0 %v1382
      %1420 = vmatpush.msra.mxu0 %v1380
      %1421 = vmatpush.msra.mxu0 %v1378
      %1422 = vmatpush.msra.mxu0 %v1376
      %1423 = vmatpush.msra.mxu0 %v1374
      %1424 = vmatpush.msra.mxu0 %v1372
      %1425 = vmatpush.msra.mxu0 %v1370
      %1426 = vmatmul.f32.gmra.mxu0 %v1388
      %v1427 = vpop.f32.mrf.mxu0
      %v1428 = vadd.f32 0.0, %v1427
      %1429 = vdwg.mxu0
      %v1430 = vadd.f32 %v1131, %v1408
      %v1431 = vadd.f32 %v1132, %v1428
      %v1432 = vld [vmem:[%s2] sm:$0x7]
      %1434 = vset.pattern.permute.xlu0 0
      %1435 = vperm.xlu0 %1434, %v1432
      %v1436 = vpop.permute.xlu0 %1435
      %v1438 = vadd.f32 %v1430, %v1436
      %v1439 = vadd.f32 %v1431, %v1436
      %v1442 = vrot.slane %v1439, 4
      %vm1443 = vcmask 1043456
      %v1444 = vsel %vm1443, %v1438, %v1442
      %1446 = vst [vmem:[%s228] sm:$0x77] %v1444
      %s1447 = smul.u32 2, %s19
      %p1448 = scmp.lt.s32.totalorder %s18, 1
      %s1449 = scalar_select %p1448, %s18, 1
      %p1450 = scmp.lt.s32.totalorder %s1447, 1
      %s1451 = scalar_select %p1450, %s1447, 1
      %s1452 = smul.addr %s1449, 2
      %s1453 = sadd.s32 %s1451, %s1452
      %s1454 = smul.addr %s1453, 4
      %s1455 = scalar_lea.vmem %s3, %s1454
      // Predicated region
      $region33: #{tpu_custom_call.1} parent=31 // pred_check
        %p1456 = pneg %p121
      $region34: #{tpu_custom_call.1} parent=31 // pred_check_branch
        %1458 = sbr.rel (%p1456) target = $region36
      $region35: #{tpu_custom_call.1} parent=31 // pred_region
        %s1459 = smul.u32 2, %s19
      $region36: #{tpu_custom_call.1} parent=31 // pred_fallthru
        _
    $region32: #{tpu_custom_call.1} parent=5 // pred_fallthru
      _
    %p1460 = scmp.le.s32.totalorder 2, %s9
    // Predicated region
    $region37: #{tpu_custom_call.1} parent=5 // pred_check
      %p1461 = pneg %p1460
    $region38: #{tpu_custom_call.1} parent=5 // pred_check_branch
      %1463 = sbr.rel (%p1461) target = $region40
    $region39: #{tpu_custom_call.1} parent=5 // pred_region
      %s1464 = ssub.s32 %s9, 2
      // Predicated region
      $region41: #{tpu_custom_call.1} parent=39 // pred_check
        %p1465 = pneg %p127
      $region42: #{tpu_custom_call.1} parent=39 // pred_check_branch
        %1467 = sbr.rel (%p1465) target = $region44
      $region43: #{tpu_custom_call.1} parent=39 // pred_region
        %s1468 = smul.u32 2, %s21
        %p1469 = scmp.lt.s32.totalorder %s20, 1
        %s1470 = scalar_select %p1469, %s20, 1
        %p1471 = scmp.lt.s32.totalorder %s1468, 1
        %s1472 = scalar_select %p1471, %s1468, 1
        %s1473 = smul.addr %s1470, 2
        %s1474 = sadd.s32 %s1472, %s1473
        %s1475 = smul.addr %s1474, 4
        %s1476 = scalar_lea.vmem %s3, %s1475
      $region44: #{tpu_custom_call.1} parent=39 // pred_fallthru
        _
    $region40: #{tpu_custom_call.1} parent=5 // pred_fallthru
      _
  $region6: #{tpu_custom_call.1} parent=0 // loop_footer
    %s13 = sadd.s32 1, %s9
  $region7: #{tpu_custom_call.1} parent=0 // loop_footer_branch
    %8 = sbr.rel target = $region3
  $region8: #{tpu_custom_call.1} parent=0 // loop_exit
    _

</llo_original>
